<compile_context>
chip_gen: v5e
topology: v5e:2x2
jax: 0.10.0
libtpu: 0.0.40
codegen_flags: <defaults>
</compile_context>

<pallas_src>
import math

import numpy as np
import jax
import jax.numpy as jnp
from jax.experimental import pallas as pl
from jax.experimental.pallas import tpu as pltpu


def _gaussian_1d(window_size: int, sigma: float = 1.5) -> np.ndarray:
    """Deterministic 1-D Gaussian, matching gaussian() in the module."""
    g = np.array(
        [math.exp(-((x - window_size // 2) ** 2) / float(2 * sigma ** 2))
         for x in range(window_size)],
        dtype=np.float64,
    )
    return (g / g.sum()).astype(np.float32)


def _banded_blur_matrices(g: np.ndarray, H: int, W: int):
    """Banded matrices so that Gh @ X @ Gw == VALID 2-D correlation with outer(g, g)."""
    ws = g.shape[0]
    Ho, Wo = H - ws + 1, W - ws + 1
    gw = np.zeros((W, Wo), np.float32)          # row (lane) blur: X @ Gw
    for wo in range(Wo):
        gw[wo:wo + ws, wo] = g
    ght = np.zeros((Ho, H), np.float32)         # column (sublane) blur: Gh @ X
    for ho in range(Ho):
        ght[ho, ho:ho + ws] = g
    return gw, ght


def _choose_planes_per_step(B: int, H: int, W: int, budget_bytes: int = 2 << 20) -> int:
    """Largest divisor of B whose (p, H, W) input block stays within a VMEM budget.

    Keeps at least two grid steps when B > 1 so the pipeline can double-buffer
    and megacore ('parallel') can shard the grid.
    """
    cap = max(1, budget_bytes // (H * W * 4))
    if B > 1:
        cap = min(cap, max(1, B // 2))
    cap = min(cap, B)
    for p in range(cap, 0, -1):
        if B % p == 0:
            return p
    return 1


def _make_ssim_kernel():
    def kernel(c_ref, gw_ref, ght_ref, img1_ref, img2_ref, o_ref):
        c1 = c_ref[0]
        c2 = c_ref[1]

        p = img1_ref.shape[0]
        W, Wo = gw_ref.shape
        Ho, H = ght_ref.shape

        # Hoisted once per grid step; shared by all 10 batched matmuls below.
        gw_b = jnp.broadcast_to(gw_ref[...][None], (p, W, Wo))     # (p, W, Wo)
        ght_b = jnp.broadcast_to(ght_ref[...][None], (p, Ho, H))   # (p, Ho, H)

        i1 = img1_ref[...].astype(jnp.float32)    # (p, H, W)
        i2 = img2_ref[...].astype(jnp.float32)

        def blur(x):
            # Separable Gaussian as two MXU batched matmuls.
            t = jnp.einsum('phw,pwo->pho', x, gw_b,
                           preferred_element_type=jnp.float32)      # (p, H, Wo)
            return jnp.einsum('poh,phw->pow', ght_b, t,
                              preferred_element_type=jnp.float32)   # (p, Ho, Wo)

        # Stream the 5 images through the blur one at a time.
        mu1 = blur(i1)
        mu2 = blur(i2)
        e11 = blur(i1 * i1)
        e22 = blur(i2 * i2)
        e12 = blur(i1 * i2)

        mu1_sq = mu1 * mu1
        mu2_sq = mu2 * mu2
        mu1_mu2 = mu1 * mu2
        sigma1_sq = e11 - mu1_sq
        sigma2_sq = e22 - mu2_sq
        sigma12 = e12 - mu1_mu2

        v1 = 2.0 * sigma12 + c2
        v2 = sigma1_sq + sigma2_sq + c2
        ssim_map = (2.0 * mu1_mu2 + c1) * v1 / ((mu1_sq + mu2_sq + c1) * v2)

        # Per-step partial sum into this step's own output block (no serial
        # accumulator -> grid axis can be 'parallel' for megacore).
        o_ref[...] = jnp.sum(ssim_map, keepdims=True)   # (1, 1, 1)

    return kernel


def ssim_pallas(img1: jax.Array, img2: jax.Array, window_size: int = 11) -> jax.Array:
    """SSIM.forward(img1, img2) with size_average=True, val_range=None."""
    assert img1.shape == img2.shape and img1.ndim == 4, "expected NCHW inputs"
    N, C, H, W = img1.shape
    ws = min(window_size, H, W)          # real_size = min(window_size, height, width)
    Ho, Wo = H - ws + 1, W - ws + 1
    B = N * C
    p = _choose_planes_per_step(B, H, W)
    G = B // p

    g1d = _gaussian_1d(ws, 1.5)
    gw_np, ght_np = _banded_blur_matrices(g1d, H, W)

    # Glue reshape only; keep the native dtype (cast happens inside the kernel).
    img1_b = img1.reshape(B, H, W)
    img2_b = img2.reshape(B, H, W)

    # Dynamic value-range L (val_range=None path), hoisted out of the kernel so
    # the kernel can be tiled.  This is a cheap fused XLA reduction.
    mx = jnp.max(img1_b).astype(jnp.float32)
    mn = jnp.min(img1_b).astype(jnp.float32)
    max_val = jnp.where(mx > 128.0, 255.0, 1.0)
    min_val = jnp.where(mn < -0.5, -1.0, 0.0)
    L = max_val - min_val
    c1c2 = jnp.stack([(0.01 * L) ** 2, (0.03 * L) ** 2]).astype(jnp.float32)  # (2,)

    kernel = _make_ssim_kernel()

    partials = pl.pallas_call(
        kernel,
        out_shape=jax.ShapeDtypeStruct((G, 1, 1), jnp.float32),
        grid=(G,),
        in_specs=[
            pl.BlockSpec(memory_space=pltpu.MemorySpace.SMEM),   # [C1, C2]
            pl.BlockSpec((W, Wo), lambda i: (0, 0)),             # Gw  (resident)
            pl.BlockSpec((Ho, H), lambda i: (0, 0)),             # Gh  (resident)
            pl.BlockSpec((p, H, W), lambda i: (i, 0, 0)),        # img1 planes
            pl.BlockSpec((p, H, W), lambda i: (i, 0, 0)),        # img2 planes
        ],
        out_specs=pl.BlockSpec((1, 1, 1), lambda i: (i, 0, 0)),
        compiler_params=pltpu.CompilerParams(
            dimension_semantics=("parallel",),   # independent per-step partials
        ),
    )(c1c2, jnp.asarray(gw_np), jnp.asarray(ght_np), img1_b, img2_b)

    # Tiny (G-element) final reduction to the mean, done by XLA in the wrapper.
    return jnp.sum(partials) * (1.0 / float(B * Ho * Wo))


def _ssim_reference(img1: jax.Array, img2: jax.Array, window_size: int = 11) -> jax.Array:
    """Pure-JAX reference matching the PyTorch module (size_average=True)."""
    N, C, H, W = img1.shape
    ws = min(window_size, H, W)
    g = jnp.asarray(_gaussian_1d(ws, 1.5))
    w2d = jnp.outer(g, g).astype(jnp.float32)
    kern = jnp.tile(w2d[None, None], (C, 1, 1, 1))  # (C,1,ws,ws) depthwise

    def dwconv(x):
        return jax.lax.conv_general_dilated(
            x, kern, (1, 1), "VALID",
            dimension_numbers=("NCHW", "OIHW", "NCHW"),
            feature_group_count=C)

    mx = jnp.max(img1)
    mn = jnp.min(img1)
    max_val = jnp.where(mx > 128.0, 255.0, 1.0)
    min_val = jnp.where(mn < -0.5, -1.0, 0.0)
    L = max_val - min_val
    C1 = (0.01 * L) ** 2
    C2 = (0.03 * L) ** 2

    i1 = img1.astype(jnp.float32)
    i2 = img2.astype(jnp.float32)
    mu1 = dwconv(i1)
    mu2 = dwconv(i2)
    mu1_sq, mu2_sq, mu1_mu2 = mu1 * mu1, mu2 * mu2, mu1 * mu2
    sigma1_sq = dwconv(i1 * i1) - mu1_sq
    sigma2_sq = dwconv(i2 * i2) - mu2_sq
    sigma12 = dwconv(i1 * i2) - mu1_mu2
    v1 = 2.0 * sigma12 + C2
    v2 = sigma1_sq + sigma2_sq + C2
    ssim_map = (2.0 * mu1_mu2 + C1) * v1 / ((mu1_sq + mu2_sq + C1) * v2)
    return jnp.mean(ssim_map)


if __name__ == "__main__":
    key = jax.random.PRNGKey(0)
    k1, k2 = jax.random.split(key)
    # Small shapes consistent with the module: batch=2, channels=4, spatial=16
    img1 = jax.random.uniform(k1, (2, 4, 16, 16), dtype=jnp.float32)
    img2 = jax.random.uniform(k2, (2, 4, 16, 16), dtype=jnp.float32)

    res = ssim_pallas(img1, img2, window_size=11)
    jax.block_until_ready(res)
    assert jnp.isfinite(res)

    ref = _ssim_reference(img1, img2, window_size=11)
    assert abs(float(res) - float(ref)) < 1e-3, (float(res), float(ref))

    print("KERNEL_OK")
</pallas_src>

<mosaic_0001>
module attributes {stable_mosaic.version = 11 : i64} {
  func.func @kernel(%arg0: i32, %arg1: memref<2xf32, #tpu.memory_space<smem>>, %arg2: memref<16x6xf32, #tpu.memory_space<vmem>>, %arg3: memref<6x16xf32, #tpu.memory_space<vmem>>, %arg4: memref<4x16x16xf32, #tpu.memory_space<vmem>>, %arg5: memref<4x16x16xf32, #tpu.memory_space<vmem>>, %arg6: memref<1x1x1xf32, #tpu.memory_space<vmem>>) attributes {dimension_semantics = [#tpu.dimension_semantics<parallel>], iteration_bounds = array<i64: 2>, scalar_prefetch = 0 : i64, scratch_operands = 0 : i64, tpu.core_type = #tpu.core_type<tc>, window_params = [{transform_indices = @transform_0, window_bounds = array<i64: 2>}, {pipeline_mode = #tpu.pipeline_mode<synchronous>, transform_indices = @transform_1, window_bounds = array<i64: 16, 6>}, {pipeline_mode = #tpu.pipeline_mode<synchronous>, transform_indices = @transform_2, window_bounds = array<i64: 6, 16>}, {transform_indices = @transform_3, window_bounds = array<i64: 4, 16, 16>}, {transform_indices = @transform_4, window_bounds = array<i64: 4, 16, 16>}, {transform_indices = @transform_5, window_bounds = array<i64: 1, 1, 1>}]} {
    %c0 = arith.constant 0 : index
    %0 = memref.load %arg1[%c0] : memref<2xf32, #tpu.memory_space<smem>>
    %c1 = arith.constant 1 : index
    %1 = memref.load %arg1[%c1] : memref<2xf32, #tpu.memory_space<smem>>
    %c0_0 = arith.constant 0 : index
    %c0_1 = arith.constant 0 : index
    %2 = vector.load %arg2[%c0_0, %c0_1] : memref<16x6xf32, #tpu.memory_space<vmem>>, vector<16x6xf32>
    %3 = vector.shape_cast %2 : vector<16x6xf32> to vector<1x16x6xf32>
    %4 = vector.shape_cast %3 : vector<1x16x6xf32> to vector<1x16x6xf32>
    %5 = vector.broadcast %4 : vector<1x16x6xf32> to vector<4x16x6xf32>
    %c0_2 = arith.constant 0 : index
    %c0_3 = arith.constant 0 : index
    %6 = vector.load %arg3[%c0_2, %c0_3] : memref<6x16xf32, #tpu.memory_space<vmem>>, vector<6x16xf32>
    %7 = vector.shape_cast %6 : vector<6x16xf32> to vector<1x6x16xf32>
    %8 = vector.shape_cast %7 : vector<1x6x16xf32> to vector<1x6x16xf32>
    %9 = vector.broadcast %8 : vector<1x6x16xf32> to vector<4x6x16xf32>
    %c0_4 = arith.constant 0 : index
    %c0_5 = arith.constant 0 : index
    %c0_6 = arith.constant 0 : index
    %10 = vector.load %arg4[%c0_4, %c0_5, %c0_6] : memref<4x16x16xf32, #tpu.memory_space<vmem>>, vector<4x16x16xf32>
    %c0_7 = arith.constant 0 : index
    %c0_8 = arith.constant 0 : index
    %c0_9 = arith.constant 0 : index
    %11 = vector.load %arg5[%c0_7, %c0_8, %c0_9] : memref<4x16x16xf32, #tpu.memory_space<vmem>>, vector<4x16x16xf32>
    "tpu.trace_start"() <{level = 10 : i32, message = "phw,pwo->pho"}> : () -> ()
    %cst = arith.constant dense<0.000000e+00> : vector<4x16x6xf32>
    %12 = tpu.matmul %10, %5, %cst {dimension_numbers = #tpu.dot_dimension_numbers<[2], [1], [1], [2], [0, 0, 0, 1, 1, 2], [0], [0]>} : vector<4x16x16xf32>, vector<4x16x6xf32>, vector<4x16x6xf32> -> vector<4x16x6xf32>
    "tpu.trace_stop"() : () -> ()
    "tpu.trace_start"() <{level = 10 : i32, message = "poh,phw->pow"}> : () -> ()
    %cst_10 = arith.constant dense<0.000000e+00> : vector<4x6x6xf32>
    %13 = tpu.matmul %9, %12, %cst_10 {dimension_numbers = #tpu.dot_dimension_numbers<[2], [1], [1], [2], [0, 0, 0, 1, 1, 2], [0], [0]>} : vector<4x6x16xf32>, vector<4x16x6xf32>, vector<4x6x6xf32> -> vector<4x6x6xf32>
    "tpu.trace_stop"() : () -> ()
    "tpu.trace_start"() <{level = 10 : i32, message = "phw,pwo->pho"}> : () -> ()
    %cst_11 = arith.constant dense<0.000000e+00> : vector<4x16x6xf32>
    %14 = tpu.matmul %11, %5, %cst_11 {dimension_numbers = #tpu.dot_dimension_numbers<[2], [1], [1], [2], [0, 0, 0, 1, 1, 2], [0], [0]>} : vector<4x16x16xf32>, vector<4x16x6xf32>, vector<4x16x6xf32> -> vector<4x16x6xf32>
    "tpu.trace_stop"() : () -> ()
    "tpu.trace_start"() <{level = 10 : i32, message = "poh,phw->pow"}> : () -> ()
    %cst_12 = arith.constant dense<0.000000e+00> : vector<4x6x6xf32>
    %15 = tpu.matmul %9, %14, %cst_12 {dimension_numbers = #tpu.dot_dimension_numbers<[2], [1], [1], [2], [0, 0, 0, 1, 1, 2], [0], [0]>} : vector<4x6x16xf32>, vector<4x16x6xf32>, vector<4x6x6xf32> -> vector<4x6x6xf32>
    "tpu.trace_stop"() : () -> ()
    %16 = arith.mulf %10, %10 : vector<4x16x16xf32>
    "tpu.trace_start"() <{level = 10 : i32, message = "phw,pwo->pho"}> : () -> ()
    %cst_13 = arith.constant dense<0.000000e+00> : vector<4x16x6xf32>
    %17 = tpu.matmul %16, %5, %cst_13 {dimension_numbers = #tpu.dot_dimension_numbers<[2], [1], [1], [2], [0, 0, 0, 1, 1, 2], [0], [0]>} : vector<4x16x16xf32>, vector<4x16x6xf32>, vector<4x16x6xf32> -> vector<4x16x6xf32>
    "tpu.trace_stop"() : () -> ()
    "tpu.trace_start"() <{level = 10 : i32, message = "poh,phw->pow"}> : () -> ()
    %cst_14 = arith.constant dense<0.000000e+00> : vector<4x6x6xf32>
    %18 = tpu.matmul %9, %17, %cst_14 {dimension_numbers = #tpu.dot_dimension_numbers<[2], [1], [1], [2], [0, 0, 0, 1, 1, 2], [0], [0]>} : vector<4x6x16xf32>, vector<4x16x6xf32>, vector<4x6x6xf32> -> vector<4x6x6xf32>
    "tpu.trace_stop"() : () -> ()
    %19 = arith.mulf %11, %11 : vector<4x16x16xf32>
    "tpu.trace_start"() <{level = 10 : i32, message = "phw,pwo->pho"}> : () -> ()
    %cst_15 = arith.constant dense<0.000000e+00> : vector<4x16x6xf32>
    %20 = tpu.matmul %19, %5, %cst_15 {dimension_numbers = #tpu.dot_dimension_numbers<[2], [1], [1], [2], [0, 0, 0, 1, 1, 2], [0], [0]>} : vector<4x16x16xf32>, vector<4x16x6xf32>, vector<4x16x6xf32> -> vector<4x16x6xf32>
    "tpu.trace_stop"() : () -> ()
    "tpu.trace_start"() <{level = 10 : i32, message = "poh,phw->pow"}> : () -> ()
    %cst_16 = arith.constant dense<0.000000e+00> : vector<4x6x6xf32>
    %21 = tpu.matmul %9, %20, %cst_16 {dimension_numbers = #tpu.dot_dimension_numbers<[2], [1], [1], [2], [0, 0, 0, 1, 1, 2], [0], [0]>} : vector<4x6x16xf32>, vector<4x16x6xf32>, vector<4x6x6xf32> -> vector<4x6x6xf32>
    "tpu.trace_stop"() : () -> ()
    %22 = arith.mulf %10, %11 : vector<4x16x16xf32>
    "tpu.trace_start"() <{level = 10 : i32, message = "phw,pwo->pho"}> : () -> ()
    %cst_17 = arith.constant dense<0.000000e+00> : vector<4x16x6xf32>
    %23 = tpu.matmul %22, %5, %cst_17 {dimension_numbers = #tpu.dot_dimension_numbers<[2], [1], [1], [2], [0, 0, 0, 1, 1, 2], [0], [0]>} : vector<4x16x16xf32>, vector<4x16x6xf32>, vector<4x16x6xf32> -> vector<4x16x6xf32>
    "tpu.trace_stop"() : () -> ()
    "tpu.trace_start"() <{level = 10 : i32, message = "poh,phw->pow"}> : () -> ()
    %cst_18 = arith.constant dense<0.000000e+00> : vector<4x6x6xf32>
    %24 = tpu.matmul %9, %23, %cst_18 {dimension_numbers = #tpu.dot_dimension_numbers<[2], [1], [1], [2], [0, 0, 0, 1, 1, 2], [0], [0]>} : vector<4x6x16xf32>, vector<4x16x6xf32>, vector<4x6x6xf32> -> vector<4x6x6xf32>
    "tpu.trace_stop"() : () -> ()
    %25 = arith.mulf %13, %13 : vector<4x6x6xf32>
    %26 = arith.mulf %15, %15 : vector<4x6x6xf32>
    %27 = arith.mulf %13, %15 : vector<4x6x6xf32>
    %28 = arith.subf %18, %25 : vector<4x6x6xf32>
    %29 = arith.subf %21, %26 : vector<4x6x6xf32>
    %30 = arith.subf %24, %27 : vector<4x6x6xf32>
    %cst_19 = arith.constant 2.000000e+00 : f32
    %31 = vector.broadcast %cst_19 : f32 to vector<4x6x6xf32>
    %32 = arith.mulf %31, %30 : vector<4x6x6xf32>
    %33 = vector.broadcast %1 : f32 to vector<4x6x6xf32>
    %34 = arith.addf %32, %33 : vector<4x6x6xf32>
    %35 = arith.addf %28, %29 : vector<4x6x6xf32>
    %36 = vector.broadcast %1 : f32 to vector<4x6x6xf32>
    %37 = arith.addf %35, %36 : vector<4x6x6xf32>
    %cst_20 = arith.constant 2.000000e+00 : f32
    %38 = vector.broadcast %cst_20 : f32 to vector<4x6x6xf32>
    %39 = arith.mulf %38, %27 : vector<4x6x6xf32>
    %40 = vector.broadcast %0 : f32 to vector<4x6x6xf32>
    %41 = arith.addf %39, %40 : vector<4x6x6xf32>
    %42 = arith.mulf %41, %34 : vector<4x6x6xf32>
    %43 = arith.addf %25, %26 : vector<4x6x6xf32>
    %44 = vector.broadcast %0 : f32 to vector<4x6x6xf32>
    %45 = arith.addf %43, %44 : vector<4x6x6xf32>
    %46 = arith.mulf %45, %37 : vector<4x6x6xf32>
    %47 = arith.divf %42, %46 : vector<4x6x6xf32>
    %48 = vector.shape_cast %47 : vector<4x6x6xf32> to vector<1x4x6x6xf32>
    %cst_21 = arith.constant dense<0.000000e+00> : vector<1xf32>
    %49 = vector.multi_reduction <add>, %48, %cst_21 [1, 2, 3] : vector<1x4x6x6xf32> to vector<1xf32>
    %50 = vector.shape_cast %49 : vector<1xf32> to vector<1x1x1x1xf32>
    %51 = vector.extract %50[0, 0, 0, 0] : f32 from vector<1x1x1x1xf32>
    %52 = vector.broadcast %51 : f32 to vector<1x1x1xf32>
    %c0_22 = arith.constant 0 : index
    %c0_23 = arith.constant 0 : index
    %c0_24 = arith.constant 0 : index
    %53 = vector.load %arg6[%c0_22, %c0_23, %c0_24] : memref<1x1x1xf32, #tpu.memory_space<vmem>>, vector<1x1x1xf32>
    tpu.vector_store %arg6[%c0_22, %c0_23, %c0_24], %52 {strides = array<i32>} : memref<1x1x1xf32, #tpu.memory_space<vmem>>, vector<1x1x1xf32>,
    return
  }
  func.func @transform_0(%arg0: i32) -> i32 {
    %c0_i32 = arith.constant 0 : i32
    %c0_i32_0 = arith.constant 0 : i32
    return %c0_i32 : i32
  }
  func.func @transform_1(%arg0: i32) -> (i32, i32) {
    %c0_i32 = arith.constant 0 : i32
    %c0_i32_0 = arith.constant 0 : i32
    %c0_i32_1 = arith.constant 0 : i32
    return %c0_i32, %c0_i32_0 : i32, i32
  }
  func.func @transform_2(%arg0: i32) -> (i32, i32) {
    %c0_i32 = arith.constant 0 : i32
    %c0_i32_0 = arith.constant 0 : i32
    %c0_i32_1 = arith.constant 0 : i32
    return %c0_i32, %c0_i32_0 : i32, i32
  }
  func.func @transform_3(%arg0: i32) -> (i32, i32, i32) {
    %c0_i32 = arith.constant 0 : i32
    %c0_i32_0 = arith.constant 0 : i32
    %c0_i32_1 = arith.constant 0 : i32
    return %arg0, %c0_i32, %c0_i32_0 : i32, i32, i32
  }
  func.func @transform_4(%arg0: i32) -> (i32, i32, i32) {
    %c0_i32 = arith.constant 0 : i32
    %c0_i32_0 = arith.constant 0 : i32
    %c0_i32_1 = arith.constant 0 : i32
    return %arg0, %c0_i32, %c0_i32_0 : i32, i32, i32
  }
  func.func @transform_5(%arg0: i32) -> (i32, i32, i32) {
    %c0_i32 = arith.constant 0 : i32
    %c0_i32_0 = arith.constant 0 : i32
    %c0_i32_1 = arith.constant 0 : i32
    return %arg0, %c0_i32, %c0_i32_0 : i32, i32, i32
  }
}

</mosaic_0001>

<llo_original>
// kernel: tpu_custom_call.1
$region0: #{tpu_custom_call.1}
  #allocation0 [shape = 'u32[]', space=smem, size = 0x4, offset = 0x4, fixed_abs, tag = 'smem constant byte address 0x4 - core index']
  #allocation1 [shape = 'u32[72,128]{1,0:T(1,128)}', space=vmem, size = 0x9000, scoped, tag = 'internal scratch']
  %s0 = inlined_call_operand.vmem [shape: f32[2], index: 0, kind: input, shape index: {}]
  %s1 = inlined_call_operand.vmem [shape: f32[16,6], index: 1, kind: input, shape index: {}]
  %s2 = inlined_call_operand.vmem [shape: f32[6,16], index: 2, kind: input, shape index: {}]
  %s3 = inlined_call_operand.hbm [shape: f32[8,16,16], index: 3, kind: input, shape index: {}]
  %s4 = inlined_call_operand.hbm [shape: f32[8,16,16], index: 4, kind: input, shape index: {}]
  %s5 = inlined_call_operand.vmem [shape: f32[2,1,1], index: 5, kind: output, shape index: {}]
  %s6 = sld [smem:[#allocation0]]
  $region65: #{tpu_custom_call.1} parent=0
    _
  %s8 = ssub.s32 1, %s6
  %s9 = scalar_select 0, %s8, %s6
  $region1: #{tpu_custom_call.1} parent=0
    #allocation2 [shape = 'u8[512]{0}', space=smem, size = 0x200, scoped, tag = 'input window, operand 0, single buffered']
    #allocation3 [shape = 's32[2]{0}', space=sflag, size = 0x8, scoped, tag = 'scoped memory for tpu_custom_call.1']
    #allocation4 [shape = 's32[2]{0}', space=sflag, size = 0x8, scoped, tag = 'scoped memory for tpu_custom_call.1']
    #allocation5 [shape = 'u8[65536]{0}', space=vmem, size = 0x10000, scoped, tag = 'input window, operand 3']
    #allocation6 [shape = 'u8[65536]{0}', space=vmem, size = 0x10000, scoped, tag = 'input window, operand 4']
    #allocation7 [shape = 's32[2]{0}', space=sflag, size = 0x8, scoped, tag = 'scoped memory for tpu_custom_call.1']
    %10 = vsyncpa [#allocation4], 0
    %11 = vsyncpa [#allocation3], 0
    %s12 = scalar_lea.sflag [#allocation3], 1
    %13 = vsyncpa %s12, 0
    %14 = vsyncpa [#allocation7], 0
    %s15 = scalar_lea.sflag [#allocation7], 1
    %16 = vsyncpa %s15, 0
    loop: start=0, step=1, limit=4
    $region2: #{tpu_custom_call.1} parent=1 // loop_pre_header
      _
    $region3: #{tpu_custom_call.1} parent=1 // loop_header
      %s18 = sphi 0, %s22
      %p19 = scmp.ge.s32.totalorder %s18, 4
      %s26 = sphi 0, %s26
      %s28 = sphi 0, %s26
      %s29 = sphi 0, %s28
      %s43 = sphi 0, %s29
      %s47 = sphi 0, %s47
      %s49 = sphi 0, %s47
      %s50 = sphi 0, %s49
      %s64 = sphi 0, %s50
      %s68 = sphi 0, %s68
      %s70 = sphi 0, %s68
      %s71 = sphi 0, %s70
      %s85 = sphi 0, %s71
      %s91 = sphi 0, %s93
      %s94 = sphi 0, %s91
      %s95 = sphi 0, %s94
      %s111 = sphi 0, %s95
      %s117 = sphi 0, %s119
      %s120 = sphi 0, %s117
      %s121 = sphi 0, %s120
      %s137 = sphi 0, %s121
      %s143 = sphi 0, %s145
      %s146 = sphi 0, %s143
      %s147 = sphi 0, %s146
      %s163 = sphi 0, %s147
    $region4: #{tpu_custom_call.1} parent=1 // loop_header_branch
      %21 = sbr.rel (%p19) target = $region8
    $region5: #{tpu_custom_call.1} parent=1 // loop_body
      %s23 = ssub.s32 %s18, 1
      %s24 = ssub.s32 %s18, 2
      %s25 = sadd.s32 %s18, 1
      %s27 = sadd.s32 %s26, 1
      %p30 = scmp.eq.s32.totalorder %s18, 1
      %p31 = scmp.ne.s32.totalorder %s26, %s28
      %p32 = scmp.eq.s32.totalorder %s18, 0
      %p33 = por %p31, %p32
      %p34 = scmp.ne.s32.totalorder %s26, %s28
      %p35 = scmp.eq.s32.totalorder %s23, 1
      %p36 = por %p34, %p35
      %p37 = scmp.ne.s32.totalorder %s28, %s29
      %p38 = scmp.eq.s32.totalorder %s23, 0
      %p39 = por %p37, %p38
      %p40 = scmp.ne.s32.totalorder %s28, %s29
      %p41 = scmp.eq.s32.totalorder %s24, 1
      %p42 = por %p40, %p41
      %p44 = scmp.ne.s32.totalorder %s29, %s43
      %p45 = scmp.eq.s32.totalorder %s24, 0
      %p46 = por %p44, %p45
      %s48 = sadd.s32 %s47, 1
      %p51 = scmp.eq.s32.totalorder %s18, 1
      %p52 = scmp.ne.s32.totalorder %s47, %s49
      %p53 = scmp.eq.s32.totalorder %s18, 0
      %p54 = por %p52, %p53
      %p55 = scmp.ne.s32.totalorder %s47, %s49
      %p56 = scmp.eq.s32.totalorder %s23, 1
      %p57 = por %p55, %p56
      %p58 = scmp.ne.s32.totalorder %s49, %s50
      %p59 = scmp.eq.s32.totalorder %s23, 0
      %p60 = por %p58, %p59
      %p61 = scmp.ne.s32.totalorder %s49, %s50
      %p62 = scmp.eq.s32.totalorder %s24, 1
      %p63 = por %p61, %p62
      %p65 = scmp.ne.s32.totalorder %s50, %s64
      %p66 = scmp.eq.s32.totalorder %s24, 0
      %p67 = por %p65, %p66
      %s69 = sadd.s32 %s68, 1
      %p72 = scmp.eq.s32.totalorder %s18, 1
      %p73 = scmp.ne.s32.totalorder %s68, %s70
      %p74 = scmp.eq.s32.totalorder %s18, 0
      %p75 = por %p73, %p74
      %p76 = scmp.ne.s32.totalorder %s68, %s70
      %p77 = scmp.eq.s32.totalorder %s23, 1
      %p78 = por %p76, %p77
      %p79 = scmp.ne.s32.totalorder %s70, %s71
      %p80 = scmp.eq.s32.totalorder %s23, 0
      %p81 = por %p79, %p80
      %p82 = scmp.ne.s32.totalorder %s70, %s71
      %p83 = scmp.eq.s32.totalorder %s24, 1
      %p84 = por %p82, %p83
      %p86 = scmp.ne.s32.totalorder %s71, %s85
      %p87 = scmp.eq.s32.totalorder %s24, 0
      %p88 = por %p86, %p87
      %s89 = ssub.s32 %s18, %s25
      %p90 = scmp.eq.s32.totalorder %s89, 0
      %s92 = sadd.s32 %s91, 1
      %s93 = scalar_select %p90, %s91, %s92
      %p96 = pneg %p90
      %p97 = scmp.eq.s32.totalorder %s18, 1
      %p98 = por %p96, %p97
      %p99 = scmp.ne.s32.totalorder %s91, %s94
      %p100 = scmp.eq.s32.totalorder %s18, 0
      %p101 = por %p99, %p100
      %p102 = scmp.ne.s32.totalorder %s91, %s94
      %p103 = scmp.eq.s32.totalorder %s23, 1
      %p104 = por %p102, %p103
      %p105 = scmp.ne.s32.totalorder %s94, %s95
      %p106 = scmp.eq.s32.totalorder %s23, 0
      %p107 = por %p105, %p106
      %p108 = scmp.ne.s32.totalorder %s94, %s95
      %p109 = scmp.eq.s32.totalorder %s24, 1
      %p110 = por %p108, %p109
      %p112 = scmp.ne.s32.totalorder %s95, %s111
      %p113 = scmp.eq.s32.totalorder %s24, 0
      %p114 = por %p112, %p113
      %s115 = ssub.s32 %s18, %s25
      %p116 = scmp.eq.s32.totalorder %s115, 0
      %s118 = sadd.s32 %s117, 1
      %s119 = scalar_select %p116, %s117, %s118
      %p122 = pneg %p116
      %p123 = scmp.eq.s32.totalorder %s18, 1
      %p124 = por %p122, %p123
      %p125 = scmp.ne.s32.totalorder %s117, %s120
      %p126 = scmp.eq.s32.totalorder %s18, 0
      %p127 = por %p125, %p126
      %p128 = scmp.ne.s32.totalorder %s117, %s120
      %p129 = scmp.eq.s32.totalorder %s23, 1
      %p130 = por %p128, %p129
      %p131 = scmp.ne.s32.totalorder %s120, %s121
      %p132 = scmp.eq.s32.totalorder %s23, 0
      %p133 = por %p131, %p132
      %p134 = scmp.ne.s32.totalorder %s120, %s121
      %p135 = scmp.eq.s32.totalorder %s24, 1
      %p136 = por %p134, %p135
      %p138 = scmp.ne.s32.totalorder %s121, %s137
      %p139 = scmp.eq.s32.totalorder %s24, 0
      %p140 = por %p138, %p139
      %s141 = ssub.s32 %s18, %s25
      %p142 = scmp.eq.s32.totalorder %s141, 0
      %s144 = sadd.s32 %s143, 1
      %s145 = scalar_select %p142, %s143, %s144
      %p148 = pneg %p142
      %p149 = scmp.eq.s32.totalorder %s18, 1
      %p150 = por %p148, %p149
      %p151 = scmp.ne.s32.totalorder %s143, %s146
      %p152 = scmp.eq.s32.totalorder %s18, 0
      %p153 = por %p151, %p152
      %p154 = scmp.ne.s32.totalorder %s143, %s146
      %p155 = scmp.eq.s32.totalorder %s23, 1
      %p156 = por %p154, %p155
      %p157 = scmp.ne.s32.totalorder %s146, %s147
      %p158 = scmp.eq.s32.totalorder %s23, 0
      %p159 = por %p157, %p158
      %p160 = scmp.ne.s32.totalorder %s146, %s147
      %p161 = scmp.eq.s32.totalorder %s24, 1
      %p162 = por %p160, %p161
      %p164 = scmp.ne.s32.totalorder %s147, %s163
      %p165 = scmp.eq.s32.totalorder %s24, 0
      %p166 = por %p164, %p165
      %p167 = scmp.le.s32.totalorder 1, %s18
      %p168 = scmp.lt.s32.totalorder %s18, 3
      %p169 = pnand %p167, %p168
      %p170 = pneg %p169
      // Predicated region
      $region9: #{tpu_custom_call.1} parent=5 // pred_check
        _
      $region10: #{tpu_custom_call.1} parent=5 // pred_check_branch
        %172 = sbr.rel (%p169) target = $region12
      $region11: #{tpu_custom_call.1} parent=5 // pred_region
        %s173 = ssub.s32 %s18, 1
        // Predicated region
        $region13: #{tpu_custom_call.1} parent=11 // pred_check
          %p174 = pneg %p39
        $region14: #{tpu_custom_call.1} parent=11 // pred_check_branch
          %176 = sbr.rel (%p174) target = $region16
        $region15: #{tpu_custom_call.1} parent=11 // pred_region
          %178 = vsyncadd [#allocation4], 0
          %s180 = sshll.u32 %s0, 4
          %s181 = int_to_ptr.vmem [resolvable:$true] %s180
          %183 = dma.vmem_to_smem %s181, 16, [#allocation2], [#allocation4]
        $region16: #{tpu_custom_call.1} parent=11 // pred_fallthru
          _
        // Predicated region
        $region17: #{tpu_custom_call.1} parent=11 // pred_check
          %p184 = pneg %p60
        $region18: #{tpu_custom_call.1} parent=11 // pred_check_branch
          %186 = sbr.rel (%p184) target = $region20
        $region19: #{tpu_custom_call.1} parent=11 // pred_region
          _
        $region20: #{tpu_custom_call.1} parent=11 // pred_fallthru
          _
        // Predicated region
        $region21: #{tpu_custom_call.1} parent=11 // pred_check
          %p187 = pneg %p81
        $region22: #{tpu_custom_call.1} parent=11 // pred_check_branch
          %189 = sbr.rel (%p187) target = $region24
        $region23: #{tpu_custom_call.1} parent=11 // pred_region
          _
        $region24: #{tpu_custom_call.1} parent=11 // pred_fallthru
          _
      $region12: #{tpu_custom_call.1} parent=5 // pred_fallthru
        _
      %p190 = scmp.lt.s32.totalorder %s18, 2
      // Predicated region
      $region25: #{tpu_custom_call.1} parent=5 // pred_check
        %p191 = pneg %p190
      $region26: #{tpu_custom_call.1} parent=5 // pred_check_branch
        %193 = sbr.rel (%p191) target = $region28
      $region27: #{tpu_custom_call.1} parent=5 // pred_region
        // Predicated region
        $region29: #{tpu_custom_call.1} parent=27 // pred_check
          %p194 = pneg %p101
        $region30: #{tpu_custom_call.1} parent=27 // pred_check_branch
          %196 = sbr.rel (%p194) target = $region32
        $region31: #{tpu_custom_call.1} parent=27 // pred_region
          %s197 = sand.u32 %s91, 1
          %s198 = scalar_lea.sflag [#allocation3], %s197
          %s199 = sand.u32 %s91, 1
          %s200 = smul.addr %s199, 64
          %s201 = scalar_lea.vmem [#allocation5], %s200
          %s202 = smul.u32 4, %s18
          %204 = vsyncadd %s198, 0
          %s205 = smul.addr %s202, 2
          %s206 = smul.addr %s205, 8
          %s207 = scalar_lea.hbm %s3, %s206
          %s208 = sshll.u32 %s207, 4
          %s209 = int_to_ptr.hbm [resolvable:$true] %s208
          %s210 = sshll.u32 %s201, 4
          %s211 = int_to_ptr.vmem [resolvable:$true] %s210
          %216 = dma.hbm_to_vmem [thread:$0]  %s209, 1024, %s211, %s198, 128, 128, 8
        $region32: #{tpu_custom_call.1} parent=27 // pred_fallthru
          _
        // Predicated region
        $region33: #{tpu_custom_call.1} parent=27 // pred_check
          %p217 = pneg %p127
        $region34: #{tpu_custom_call.1} parent=27 // pred_check_branch
          %219 = sbr.rel (%p217) target = $region36
        $region35: #{tpu_custom_call.1} parent=27 // pred_region
          %s220 = sand.u32 %s117, 1
          %s221 = scalar_lea.sflag [#allocation7], %s220
          %s222 = sand.u32 %s117, 1
          %s223 = smul.addr %s222, 64
          %s224 = scalar_lea.vmem [#allocation6], %s223
          %s225 = smul.u32 4, %s18
          %227 = vsyncadd %s221, 0
          %s228 = smul.addr %s225, 2
          %s229 = smul.addr %s228, 8
          %s230 = scalar_lea.hbm %s4, %s229
          %s231 = sshll.u32 %s230, 4
          %s232 = int_to_ptr.hbm [resolvable:$true] %s231
          %s233 = sshll.u32 %s224, 4
          %s234 = int_to_ptr.vmem [resolvable:$true] %s233
          %239 = dma.hbm_to_vmem [thread:$0]  %s232, 1024, %s234, %s221, 128, 128, 8
        $region36: #{tpu_custom_call.1} parent=27 // pred_fallthru
          _
      $region28: #{tpu_custom_call.1} parent=5 // pred_fallthru
        _
      %p240 = scmp.le.s32.totalorder 1, %s18
      %p241 = scmp.lt.s32.totalorder %s18, 3
      %p242 = pnand %p240, %p241
      %p243 = pneg %p242
      // Predicated region
      $region37: #{tpu_custom_call.1} parent=5 // pred_check
        _
      $region38: #{tpu_custom_call.1} parent=5 // pred_check_branch
        %245 = sbr.rel (%p242) target = $region40
      $region39: #{tpu_custom_call.1} parent=5 // pred_region
        %s246 = ssub.s32 %s18, 1
        // Predicated region
        $region41: #{tpu_custom_call.1} parent=39 // pred_check
          %p247 = pneg %p39
        $region42: #{tpu_custom_call.1} parent=39 // pred_check_branch
          %249 = sbr.rel (%p247) target = $region44
        $region43: #{tpu_custom_call.1} parent=39 // pred_region
          %251 = dma.done [#allocation4], 16
        $region44: #{tpu_custom_call.1} parent=39 // pred_fallthru
          _
        %s252 = sand.u32 %s94, 1
        %s253 = scalar_lea.sflag [#allocation3], %s252
        %s254 = sand.u32 %s94, 1
        %s255 = smul.addr %s254, 64
        %s256 = scalar_lea.vmem [#allocation5], %s255
        // Predicated region
        $region45: #{tpu_custom_call.1} parent=39 // pred_check
          %p257 = pneg %p107
        $region46: #{tpu_custom_call.1} parent=39 // pred_check_branch
          %259 = sbr.rel (%p257) target = $region48
        $region47: #{tpu_custom_call.1} parent=39 // pred_region
          %261 = dma.done %s253, 1024
        $region48: #{tpu_custom_call.1} parent=39 // pred_fallthru
          _
        %s262 = sand.u32 %s120, 1
        %s263 = scalar_lea.sflag [#allocation7], %s262
        %s264 = sand.u32 %s120, 1
        %s265 = smul.addr %s264, 64
        %s266 = scalar_lea.vmem [#allocation6], %s265
        // Predicated region
        $region49: #{tpu_custom_call.1} parent=39 // pred_check
          %p267 = pneg %p133
        $region50: #{tpu_custom_call.1} parent=39 // pred_check_branch
          %269 = sbr.rel (%p267) target = $region52
        $region51: #{tpu_custom_call.1} parent=39 // pred_region
          %271 = dma.done %s263, 1024
        $region52: #{tpu_custom_call.1} parent=39 // pred_fallthru
          _
        %272 = sfence
        %p273 = pneg %p39
        %p274 = pneg %p36
        %p275 = pneg %p60
        %p276 = pneg %p57
        %p277 = pneg %p81
        %p278 = pneg %p78
        %s279 = sand.u32 %s94, 1
        %s280 = scalar_lea.sflag [#allocation3], %s279
        %s281 = sand.u32 %s94, 1
        %s282 = smul.addr %s281, 64
        %s283 = scalar_lea.vmem [#allocation5], %s282
        %p284 = pneg %p107
        %p285 = pneg %p104
        %s286 = sand.u32 %s120, 1
        %s287 = scalar_lea.sflag [#allocation7], %s286
        %s288 = sand.u32 %s120, 1
        %s289 = smul.addr %s288, 64
        %s290 = scalar_lea.vmem [#allocation6], %s289
        %p291 = pneg %p133
        %p292 = pneg %p130
        %p293 = pneg %p159
        %p294 = pneg %p156
        %p295 = scmp.lt.s32.totalorder %s23, 1
        %s296 = scalar_select %p295, %s23, 1
        %s297 = scalar_lea.vmem %s5, %s296
        %s298 = smul.u32 4, %s23
        %s299 = smul.u32 4, %s23
        %p300 = scmp.lt.s32.totalorder %s23, 1
        %s301 = scalar_select %p300, %s23, 1
        %s302 = scalar_lea.vmem %s5, %s301
        %s303 = sld [smem:[#allocation2]]
        %s304 = sld [smem:[#allocation2 + $0x1]]
        %v305 = vld [vmem:[%s1] sm:$0xff]
        %v306 = vld [vmem:[%s1 + $0x8] sm:$0xff]
        %v307 = vld [vmem:[%s2] sm:$0x3f]
        %v308 = vld [vmem:[%s256] sm:$0xff]
        %v309 = vld [vmem:[%s256 + $0x8] sm:$0xff]
        %v310 = vld [vmem:[%s256 + $0x10] sm:$0xff]
        %v311 = vld [vmem:[%s256 + $0x18] sm:$0xff]
        %v312 = vld [vmem:[%s256 + $0x20] sm:$0xff]
        %v313 = vld [vmem:[%s256 + $0x28] sm:$0xff]
        %v314 = vld [vmem:[%s256 + $0x30] sm:$0xff]
        %v315 = vld [vmem:[%s256 + $0x38] sm:$0xff]
        %v316 = vld [vmem:[%s266] sm:$0xff]
        %v317 = vld [vmem:[%s266 + $0x8] sm:$0xff]
        %v318 = vld [vmem:[%s266 + $0x10] sm:$0xff]
        %v319 = vld [vmem:[%s266 + $0x18] sm:$0xff]
        %v320 = vld [vmem:[%s266 + $0x20] sm:$0xff]
        %v321 = vld [vmem:[%s266 + $0x28] sm:$0xff]
        %v322 = vld [vmem:[%s266 + $0x30] sm:$0xff]
        %v323 = vld [vmem:[%s266 + $0x38] sm:$0xff]
        %vm324 = vcmask 130048
        %v326 = vsel %vm324, %v308, 0
        %v329 = vsel %vm324, %v309, 0
        %331 = vmatpush.msra.mxu0 0.0
        %332 = vmatpush.msra.mxu0 0.0
        %333 = vmatpush.msra.mxu0 0.0
        %334 = vmatpush.msra.mxu0 0.0
        %335 = vmatpush.msra.mxu0 0.0
        %336 = vmatpush.msra.mxu0 0.0
        %337 = vmatpush.msra.mxu0 0.0
        %338 = vmatpush.msra.mxu0 0.0
        %339 = vmatpush.msra.mxu0 0.0
        %340 = vmatpush.msra.mxu0 0.0
        %341 = vmatpush.msra.mxu0 0.0
        %342 = vmatpush.msra.mxu0 0.0
        %343 = vmatpush.msra.mxu0 0.0
        %344 = vmatpush.msra.mxu0 0.0
        %345 = vmatpush.msra.mxu0 %v306
        %346 = vmatpush.msra.mxu0 %v305
        %347 = vmatmul.f32.gmra.mxu0 %v326
        %v348 = vpop.f32.mrf.mxu0
        %v349 = vadd.f32 0.0, %v348
        %350 = vmatmul.f32.gmra.mxu0 %v329
        %v351 = vpop.f32.mrf.mxu0
        %v352 = vadd.f32 0.0, %v351
        %353 = vdwg.mxu0
        %v355 = vsel %vm324, %v310, 0
        %v358 = vsel %vm324, %v311, 0
        %360 = vmatpush.msra.mxu0 0.0
        %361 = vmatpush.msra.mxu0 0.0
        %362 = vmatpush.msra.mxu0 0.0
        %363 = vmatpush.msra.mxu0 0.0
        %364 = vmatpush.msra.mxu0 0.0
        %365 = vmatpush.msra.mxu0 0.0
        %366 = vmatpush.msra.mxu0 0.0
        %367 = vmatpush.msra.mxu0 0.0
        %368 = vmatpush.msra.mxu0 0.0
        %369 = vmatpush.msra.mxu0 0.0
        %370 = vmatpush.msra.mxu0 0.0
        %371 = vmatpush.msra.mxu0 0.0
        %372 = vmatpush.msra.mxu0 0.0
        %373 = vmatpush.msra.mxu0 0.0
        %374 = vmatpush.msra.mxu0 %v306
        %375 = vmatpush.msra.mxu0 %v305
        %376 = vmatmul.f32.gmra.mxu0 %v355
        %v377 = vpop.f32.mrf.mxu0
        %v378 = vadd.f32 0.0, %v377
        %379 = vmatmul.f32.gmra.mxu0 %v358
        %v380 = vpop.f32.mrf.mxu0
        %v381 = vadd.f32 0.0, %v380
        %382 = vdwg.mxu0
        %v384 = vsel %vm324, %v312, 0
        %v387 = vsel %vm324, %v313, 0
        %389 = vmatpush.msra.mxu0 0.0
        %390 = vmatpush.msra.mxu0 0.0
        %391 = vmatpush.msra.mxu0 0.0
        %392 = vmatpush.msra.mxu0 0.0
        %393 = vmatpush.msra.mxu0 0.0
        %394 = vmatpush.msra.mxu0 0.0
        %395 = vmatpush.msra.mxu0 0.0
        %396 = vmatpush.msra.mxu0 0.0
        %397 = vmatpush.msra.mxu0 0.0
        %398 = vmatpush.msra.mxu0 0.0
        %399 = vmatpush.msra.mxu0 0.0
        %400 = vmatpush.msra.mxu0 0.0
        %401 = vmatpush.msra.mxu0 0.0
        %402 = vmatpush.msra.mxu0 0.0
        %403 = vmatpush.msra.mxu0 %v306
        %404 = vmatpush.msra.mxu0 %v305
        %405 = vmatmul.f32.gmra.mxu0 %v384
        %v406 = vpop.f32.mrf.mxu0
        %v407 = vadd.f32 0.0, %v406
        %408 = vmatmul.f32.gmra.mxu0 %v387
        %v409 = vpop.f32.mrf.mxu0
        %v410 = vadd.f32 0.0, %v409
        %411 = vdwg.mxu0
        %v413 = vsel %vm324, %v314, 0
        %v416 = vsel %vm324, %v315, 0
        %418 = vmatpush.msra.mxu0 0.0
        %419 = vmatpush.msra.mxu0 0.0
        %420 = vmatpush.msra.mxu0 0.0
        %421 = vmatpush.msra.mxu0 0.0
        %422 = vmatpush.msra.mxu0 0.0
        %423 = vmatpush.msra.mxu0 0.0
        %424 = vmatpush.msra.mxu0 0.0
        %425 = vmatpush.msra.mxu0 0.0
        %426 = vmatpush.msra.mxu0 0.0
        %427 = vmatpush.msra.mxu0 0.0
        %428 = vmatpush.msra.mxu0 0.0
        %429 = vmatpush.msra.mxu0 0.0
        %430 = vmatpush.msra.mxu0 0.0
        %431 = vmatpush.msra.mxu0 0.0
        %432 = vmatpush.msra.mxu0 %v306
        %433 = vmatpush.msra.mxu0 %v305
        %434 = vmatmul.f32.gmra.mxu0 %v413
        %v435 = vpop.f32.mrf.mxu0
        %v436 = vadd.f32 0.0, %v435
        %437 = vmatmul.f32.gmra.mxu0 %v416
        %v438 = vpop.f32.mrf.mxu0
        %v439 = vadd.f32 0.0, %v438
        %440 = vdwg.mxu0
        %v442 = vsel %vm324, %v307, 0
        %444 = vmatpush.msra.mxu0 0.0
        %445 = vmatpush.msra.mxu0 0.0
        %446 = vmatpush.msra.mxu0 0.0
        %447 = vmatpush.msra.mxu0 0.0
        %448 = vmatpush.msra.mxu0 0.0
        %449 = vmatpush.msra.mxu0 0.0
        %450 = vmatpush.msra.mxu0 0.0
        %451 = vmatpush.msra.mxu0 0.0
        %452 = vmatpush.msra.mxu0 0.0
        %453 = vmatpush.msra.mxu0 0.0
        %454 = vmatpush.msra.mxu0 0.0
        %455 = vmatpush.msra.mxu0 0.0
        %456 = vmatpush.msra.mxu0 0.0
        %457 = vmatpush.msra.mxu0 0.0
        %458 = vmatpush.msra.mxu0 %v352
        %459 = vmatpush.msra.mxu0 %v349
        %460 = vmatmul.f32.gmra.mxu0 %v442
        %v461 = vpop.f32.mrf.mxu0
        %v462 = vadd.f32 0.0, %v461
        %463 = vdwg.mxu0
        %464 = vmatpush.msra.mxu0 0.0
        %465 = vmatpush.msra.mxu0 0.0
        %466 = vmatpush.msra.mxu0 0.0
        %467 = vmatpush.msra.mxu0 0.0
        %468 = vmatpush.msra.mxu0 0.0
        %469 = vmatpush.msra.mxu0 0.0
        %470 = vmatpush.msra.mxu0 0.0
        %471 = vmatpush.msra.mxu0 0.0
        %472 = vmatpush.msra.mxu0 0.0
        %473 = vmatpush.msra.mxu0 0.0
        %474 = vmatpush.msra.mxu0 0.0
        %475 = vmatpush.msra.mxu0 0.0
        %476 = vmatpush.msra.mxu0 0.0
        %477 = vmatpush.msra.mxu0 0.0
        %478 = vmatpush.msra.mxu0 %v381
        %479 = vmatpush.msra.mxu0 %v378
        %480 = vmatmul.f32.gmra.mxu0 %v442
        %v481 = vpop.f32.mrf.mxu0
        %v482 = vadd.f32 0.0, %v481
        %483 = vdwg.mxu0
        %484 = vmatpush.msra.mxu0 0.0
        %485 = vmatpush.msra.mxu0 0.0
        %486 = vmatpush.msra.mxu0 0.0
        %487 = vmatpush.msra.mxu0 0.0
        %488 = vmatpush.msra.mxu0 0.0
        %489 = vmatpush.msra.mxu0 0.0
        %490 = vmatpush.msra.mxu0 0.0
        %491 = vmatpush.msra.mxu0 0.0
        %492 = vmatpush.msra.mxu0 0.0
        %493 = vmatpush.msra.mxu0 0.0
        %494 = vmatpush.msra.mxu0 0.0
        %495 = vmatpush.msra.mxu0 0.0
        %496 = vmatpush.msra.mxu0 0.0
        %497 = vmatpush.msra.mxu0 0.0
        %498 = vmatpush.msra.mxu0 %v410
        %499 = vmatpush.msra.mxu0 %v407
        %500 = vmatmul.f32.gmra.mxu0 %v442
        %v501 = vpop.f32.mrf.mxu0
        %v502 = vadd.f32 0.0, %v501
        %503 = vdwg.mxu0
        %504 = vmatpush.msra.mxu0 0.0
        %505 = vmatpush.msra.mxu0 0.0
        %506 = vmatpush.msra.mxu0 0.0
        %507 = vmatpush.msra.mxu0 0.0
        %508 = vmatpush.msra.mxu0 0.0
        %509 = vmatpush.msra.mxu0 0.0
        %510 = vmatpush.msra.mxu0 0.0
        %511 = vmatpush.msra.mxu0 0.0
        %512 = vmatpush.msra.mxu0 0.0
        %513 = vmatpush.msra.mxu0 0.0
        %514 = vmatpush.msra.mxu0 0.0
        %515 = vmatpush.msra.mxu0 0.0
        %516 = vmatpush.msra.mxu0 0.0
        %517 = vmatpush.msra.mxu0 0.0
        %518 = vmatpush.msra.mxu0 %v439
        %519 = vmatpush.msra.mxu0 %v436
        %520 = vmatmul.f32.gmra.mxu0 %v442
        %v521 = vpop.f32.mrf.mxu0
        %v522 = vadd.f32 0.0, %v521
        %523 = vdwg.mxu0
        %v525 = vsel %vm324, %v316, 0
        %v528 = vsel %vm324, %v317, 0
        %530 = vmatpush.msra.mxu0 0.0
        %531 = vmatpush.msra.mxu0 0.0
        %532 = vmatpush.msra.mxu0 0.0
        %533 = vmatpush.msra.mxu0 0.0
        %534 = vmatpush.msra.mxu0 0.0
        %535 = vmatpush.msra.mxu0 0.0
        %536 = vmatpush.msra.mxu0 0.0
        %537 = vmatpush.msra.mxu0 0.0
        %538 = vmatpush.msra.mxu0 0.0
        %539 = vmatpush.msra.mxu0 0.0
        %540 = vmatpush.msra.mxu0 0.0
        %541 = vmatpush.msra.mxu0 0.0
        %542 = vmatpush.msra.mxu0 0.0
        %543 = vmatpush.msra.mxu0 0.0
        %544 = vmatpush.msra.mxu0 %v306
        %545 = vmatpush.msra.mxu0 %v305
        %546 = vmatmul.f32.gmra.mxu0 %v525
        %v547 = vpop.f32.mrf.mxu0
        %v548 = vadd.f32 0.0, %v547
        %549 = vmatmul.f32.gmra.mxu0 %v528
        %v550 = vpop.f32.mrf.mxu0
        %v551 = vadd.f32 0.0, %v550
        %552 = vdwg.mxu0
        %v554 = vsel %vm324, %v318, 0
        %v557 = vsel %vm324, %v319, 0
        %559 = vmatpush.msra.mxu0 0.0
        %560 = vmatpush.msra.mxu0 0.0
        %561 = vmatpush.msra.mxu0 0.0
        %562 = vmatpush.msra.mxu0 0.0
        %563 = vmatpush.msra.mxu0 0.0
        %564 = vmatpush.msra.mxu0 0.0
        %565 = vmatpush.msra.mxu0 0.0
        %566 = vmatpush.msra.mxu0 0.0
        %567 = vmatpush.msra.mxu0 0.0
        %568 = vmatpush.msra.mxu0 0.0
        %569 = vmatpush.msra.mxu0 0.0
        %570 = vmatpush.msra.mxu0 0.0
        %571 = vmatpush.msra.mxu0 0.0
        %572 = vmatpush.msra.mxu0 0.0
        %573 = vmatpush.msra.mxu0 %v306
        %574 = vmatpush.msra.mxu0 %v305
        %575 = vmatmul.f32.gmra.mxu0 %v554
        %v576 = vpop.f32.mrf.mxu0
        %v577 = vadd.f32 0.0, %v576
        %578 = vmatmul.f32.gmra.mxu0 %v557
        %v579 = vpop.f32.mrf.mxu0
        %v580 = vadd.f32 0.0, %v579
        %581 = vdwg.mxu0
        %v583 = vsel %vm324, %v320, 0
        %v586 = vsel %vm324, %v321, 0
        %588 = vmatpush.msra.mxu0 0.0
        %589 = vmatpush.msra.mxu0 0.0
        %590 = vmatpush.msra.mxu0 0.0
        %591 = vmatpush.msra.mxu0 0.0
        %592 = vmatpush.msra.mxu0 0.0
        %593 = vmatpush.msra.mxu0 0.0
        %594 = vmatpush.msra.mxu0 0.0
        %595 = vmatpush.msra.mxu0 0.0
        %596 = vmatpush.msra.mxu0 0.0
        %597 = vmatpush.msra.mxu0 0.0
        %598 = vmatpush.msra.mxu0 0.0
        %599 = vmatpush.msra.mxu0 0.0
        %600 = vmatpush.msra.mxu0 0.0
        %601 = vmatpush.msra.mxu0 0.0
        %602 = vmatpush.msra.mxu0 %v306
        %603 = vmatpush.msra.mxu0 %v305
        %604 = vmatmul.f32.gmra.mxu0 %v583
        %v605 = vpop.f32.mrf.mxu0
        %v606 = vadd.f32 0.0, %v605
        %607 = vmatmul.f32.gmra.mxu0 %v586
        %v608 = vpop.f32.mrf.mxu0
        %v609 = vadd.f32 0.0, %v608
        %610 = vdwg.mxu0
        %v612 = vsel %vm324, %v322, 0
        %v615 = vsel %vm324, %v323, 0
        %617 = vmatpush.msra.mxu0 0.0
        %618 = vmatpush.msra.mxu0 0.0
        %619 = vmatpush.msra.mxu0 0.0
        %620 = vmatpush.msra.mxu0 0.0
        %621 = vmatpush.msra.mxu0 0.0
        %622 = vmatpush.msra.mxu0 0.0
        %623 = vmatpush.msra.mxu0 0.0
        %624 = vmatpush.msra.mxu0 0.0
        %625 = vmatpush.msra.mxu0 0.0
        %626 = vmatpush.msra.mxu0 0.0
        %627 = vmatpush.msra.mxu0 0.0
        %628 = vmatpush.msra.mxu0 0.0
        %629 = vmatpush.msra.mxu0 0.0
        %630 = vmatpush.msra.mxu0 0.0
        %631 = vmatpush.msra.mxu0 %v306
        %632 = vmatpush.msra.mxu0 %v305
        %633 = vmatmul.f32.gmra.mxu0 %v612
        %v634 = vpop.f32.mrf.mxu0
        %v635 = vadd.f32 0.0, %v634
        %636 = vmatmul.f32.gmra.mxu0 %v615
        %v637 = vpop.f32.mrf.mxu0
        %v638 = vadd.f32 0.0, %v637
        %639 = vdwg.mxu0
        %640 = vmatpush.msra.mxu0 0.0
        %641 = vmatpush.msra.mxu0 0.0
        %642 = vmatpush.msra.mxu0 0.0
        %643 = vmatpush.msra.mxu0 0.0
        %644 = vmatpush.msra.mxu0 0.0
        %645 = vmatpush.msra.mxu0 0.0
        %646 = vmatpush.msra.mxu0 0.0
        %647 = vmatpush.msra.mxu0 0.0
        %648 = vmatpush.msra.mxu0 0.0
        %649 = vmatpush.msra.mxu0 0.0
        %650 = vmatpush.msra.mxu0 0.0
        %651 = vmatpush.msra.mxu0 0.0
        %652 = vmatpush.msra.mxu0 0.0
        %653 = vmatpush.msra.mxu0 0.0
        %654 = vmatpush.msra.mxu0 %v551
        %655 = vmatpush.msra.mxu0 %v548
        %656 = vmatmul.f32.gmra.mxu0 %v442
        %v657 = vpop.f32.mrf.mxu0
        %v658 = vadd.f32 0.0, %v657
        %659 = vdwg.mxu0
        %660 = vmatpush.msra.mxu0 0.0
        %661 = vmatpush.msra.mxu0 0.0
        %662 = vmatpush.msra.mxu0 0.0
        %663 = vmatpush.msra.mxu0 0.0
        %664 = vmatpush.msra.mxu0 0.0
        %665 = vmatpush.msra.mxu0 0.0
        %666 = vmatpush.msra.mxu0 0.0
        %667 = vmatpush.msra.mxu0 0.0
        %668 = vmatpush.msra.mxu0 0.0
        %669 = vmatpush.msra.mxu0 0.0
        %670 = vmatpush.msra.mxu0 0.0
        %671 = vmatpush.msra.mxu0 0.0
        %672 = vmatpush.msra.mxu0 0.0
        %673 = vmatpush.msra.mxu0 0.0
        %674 = vmatpush.msra.mxu0 %v580
        %675 = vmatpush.msra.mxu0 %v577
        %676 = vmatmul.f32.gmra.mxu0 %v442
        %v677 = vpop.f32.mrf.mxu0
        %v678 = vadd.f32 0.0, %v677
        %679 = vdwg.mxu0
        %680 = vmatpush.msra.mxu0 0.0
        %681 = vmatpush.msra.mxu0 0.0
        %682 = vmatpush.msra.mxu0 0.0
        %683 = vmatpush.msra.mxu0 0.0
        %684 = vmatpush.msra.mxu0 0.0
        %685 = vmatpush.msra.mxu0 0.0
        %686 = vmatpush.msra.mxu0 0.0
        %687 = vmatpush.msra.mxu0 0.0
        %688 = vmatpush.msra.mxu0 0.0
        %689 = vmatpush.msra.mxu0 0.0
        %690 = vmatpush.msra.mxu0 0.0
        %691 = vmatpush.msra.mxu0 0.0
        %692 = vmatpush.msra.mxu0 0.0
        %693 = vmatpush.msra.mxu0 0.0
        %694 = vmatpush.msra.mxu0 %v609
        %695 = vmatpush.msra.mxu0 %v606
        %696 = vmatmul.f32.gmra.mxu0 %v442
        %v697 = vpop.f32.mrf.mxu0
        %v698 = vadd.f32 0.0, %v697
        %699 = vdwg.mxu0
        %700 = vmatpush.msra.mxu0 0.0
        %701 = vmatpush.msra.mxu0 0.0
        %702 = vmatpush.msra.mxu0 0.0
        %703 = vmatpush.msra.mxu0 0.0
        %704 = vmatpush.msra.mxu0 0.0
        %705 = vmatpush.msra.mxu0 0.0
        %706 = vmatpush.msra.mxu0 0.0
        %707 = vmatpush.msra.mxu0 0.0
        %708 = vmatpush.msra.mxu0 0.0
        %709 = vmatpush.msra.mxu0 0.0
        %710 = vmatpush.msra.mxu0 0.0
        %711 = vmatpush.msra.mxu0 0.0
        %712 = vmatpush.msra.mxu0 0.0
        %713 = vmatpush.msra.mxu0 0.0
        %714 = vmatpush.msra.mxu0 %v638
        %715 = vmatpush.msra.mxu0 %v635
        %716 = vmatmul.f32.gmra.mxu0 %v442
        %v717 = vpop.f32.mrf.mxu0
        %v718 = vadd.f32 0.0, %v717
        %719 = vdwg.mxu0
        %v720 = vmul.f32 %v308, %v308
        %v721 = vmul.f32 %v309, %v309
        %v722 = vmul.f32 %v310, %v310
        %v723 = vmul.f32 %v311, %v311
        %v724 = vmul.f32 %v312, %v312
        %v725 = vmul.f32 %v313, %v313
        %v726 = vmul.f32 %v314, %v314
        %v727 = vmul.f32 %v315, %v315
        %v729 = vsel %vm324, %v720, 0
        %v732 = vsel %vm324, %v721, 0
        %734 = vmatpush.msra.mxu0 0.0
        %735 = vmatpush.msra.mxu0 0.0
        %736 = vmatpush.msra.mxu0 0.0
        %737 = vmatpush.msra.mxu0 0.0
        %738 = vmatpush.msra.mxu0 0.0
        %739 = vmatpush.msra.mxu0 0.0
        %740 = vmatpush.msra.mxu0 0.0
        %741 = vmatpush.msra.mxu0 0.0
        %742 = vmatpush.msra.mxu0 0.0
        %743 = vmatpush.msra.mxu0 0.0
        %744 = vmatpush.msra.mxu0 0.0
        %745 = vmatpush.msra.mxu0 0.0
        %746 = vmatpush.msra.mxu0 0.0
        %747 = vmatpush.msra.mxu0 0.0
        %748 = vmatpush.msra.mxu0 %v306
        %749 = vmatpush.msra.mxu0 %v305
        %750 = vmatmul.f32.gmra.mxu0 %v729
        %v751 = vpop.f32.mrf.mxu0
        %v752 = vadd.f32 0.0, %v751
        %753 = vmatmul.f32.gmra.mxu0 %v732
        %v754 = vpop.f32.mrf.mxu0
        %v755 = vadd.f32 0.0, %v754
        %756 = vdwg.mxu0
        %v758 = vsel %vm324, %v722, 0
        %v761 = vsel %vm324, %v723, 0
        %763 = vmatpush.msra.mxu0 0.0
        %764 = vmatpush.msra.mxu0 0.0
        %765 = vmatpush.msra.mxu0 0.0
        %766 = vmatpush.msra.mxu0 0.0
        %767 = vmatpush.msra.mxu0 0.0
        %768 = vmatpush.msra.mxu0 0.0
        %769 = vmatpush.msra.mxu0 0.0
        %770 = vmatpush.msra.mxu0 0.0
        %771 = vmatpush.msra.mxu0 0.0
        %772 = vmatpush.msra.mxu0 0.0
        %773 = vmatpush.msra.mxu0 0.0
        %774 = vmatpush.msra.mxu0 0.0
        %775 = vmatpush.msra.mxu0 0.0
        %776 = vmatpush.msra.mxu0 0.0
        %777 = vmatpush.msra.mxu0 %v306
        %778 = vmatpush.msra.mxu0 %v305
        %779 = vmatmul.f32.gmra.mxu0 %v758
        %v780 = vpop.f32.mrf.mxu0
        %v781 = vadd.f32 0.0, %v780
        %782 = vmatmul.f32.gmra.mxu0 %v761
        %v783 = vpop.f32.mrf.mxu0
        %v784 = vadd.f32 0.0, %v783
        %785 = vdwg.mxu0
        %v787 = vsel %vm324, %v724, 0
        %v790 = vsel %vm324, %v725, 0
        %792 = vmatpush.msra.mxu0 0.0
        %793 = vmatpush.msra.mxu0 0.0
        %794 = vmatpush.msra.mxu0 0.0
        %795 = vmatpush.msra.mxu0 0.0
        %796 = vmatpush.msra.mxu0 0.0
        %797 = vmatpush.msra.mxu0 0.0
        %798 = vmatpush.msra.mxu0 0.0
        %799 = vmatpush.msra.mxu0 0.0
        %800 = vmatpush.msra.mxu0 0.0
        %801 = vmatpush.msra.mxu0 0.0
        %802 = vmatpush.msra.mxu0 0.0
        %803 = vmatpush.msra.mxu0 0.0
        %804 = vmatpush.msra.mxu0 0.0
        %805 = vmatpush.msra.mxu0 0.0
        %806 = vmatpush.msra.mxu0 %v306
        %807 = vmatpush.msra.mxu0 %v305
        %808 = vmatmul.f32.gmra.mxu0 %v787
        %v809 = vpop.f32.mrf.mxu0
        %v810 = vadd.f32 0.0, %v809
        %811 = vmatmul.f32.gmra.mxu0 %v790
        %v812 = vpop.f32.mrf.mxu0
        %v813 = vadd.f32 0.0, %v812
        %814 = vdwg.mxu0
        %v816 = vsel %vm324, %v726, 0
        %v819 = vsel %vm324, %v727, 0
        %821 = vmatpush.msra.mxu0 0.0
        %822 = vmatpush.msra.mxu0 0.0
        %823 = vmatpush.msra.mxu0 0.0
        %824 = vmatpush.msra.mxu0 0.0
        %825 = vmatpush.msra.mxu0 0.0
        %826 = vmatpush.msra.mxu0 0.0
        %827 = vmatpush.msra.mxu0 0.0
        %828 = vmatpush.msra.mxu0 0.0
        %829 = vmatpush.msra.mxu0 0.0
        %830 = vmatpush.msra.mxu0 0.0
        %831 = vmatpush.msra.mxu0 0.0
        %832 = vmatpush.msra.mxu0 0.0
        %833 = vmatpush.msra.mxu0 0.0
        %834 = vmatpush.msra.mxu0 0.0
        %835 = vmatpush.msra.mxu0 %v306
        %836 = vmatpush.msra.mxu0 %v305
        %837 = vmatmul.f32.gmra.mxu0 %v816
        %v838 = vpop.f32.mrf.mxu0
        %v839 = vadd.f32 0.0, %v838
        %840 = vmatmul.f32.gmra.mxu0 %v819
        %v841 = vpop.f32.mrf.mxu0
        %v842 = vadd.f32 0.0, %v841
        %843 = vdwg.mxu0
        %844 = vmatpush.msra.mxu0 0.0
        %845 = vmatpush.msra.mxu0 0.0
        %846 = vmatpush.msra.mxu0 0.0
        %847 = vmatpush.msra.mxu0 0.0
        %848 = vmatpush.msra.mxu0 0.0
        %849 = vmatpush.msra.mxu0 0.0
        %850 = vmatpush.msra.mxu0 0.0
        %851 = vmatpush.msra.mxu0 0.0
        %852 = vmatpush.msra.mxu0 0.0
        %853 = vmatpush.msra.mxu0 0.0
        %854 = vmatpush.msra.mxu0 0.0
        %855 = vmatpush.msra.mxu0 0.0
        %856 = vmatpush.msra.mxu0 0.0
        %857 = vmatpush.msra.mxu0 0.0
        %858 = vmatpush.msra.mxu0 %v755
        %859 = vmatpush.msra.mxu0 %v752
        %860 = vmatmul.f32.gmra.mxu0 %v442
        %v861 = vpop.f32.mrf.mxu0
        %v862 = vadd.f32 0.0, %v861
        %863 = vdwg.mxu0
        %864 = vmatpush.msra.mxu0 0.0
        %865 = vmatpush.msra.mxu0 0.0
        %866 = vmatpush.msra.mxu0 0.0
        %867 = vmatpush.msra.mxu0 0.0
        %868 = vmatpush.msra.mxu0 0.0
        %869 = vmatpush.msra.mxu0 0.0
        %870 = vmatpush.msra.mxu0 0.0
        %871 = vmatpush.msra.mxu0 0.0
        %872 = vmatpush.msra.mxu0 0.0
        %873 = vmatpush.msra.mxu0 0.0
        %874 = vmatpush.msra.mxu0 0.0
        %875 = vmatpush.msra.mxu0 0.0
        %876 = vmatpush.msra.mxu0 0.0
        %877 = vmatpush.msra.mxu0 0.0
        %878 = vmatpush.msra.mxu0 %v784
        %879 = vmatpush.msra.mxu0 %v781
        %880 = vmatmul.f32.gmra.mxu0 %v442
        %v881 = vpop.f32.mrf.mxu0
        %v882 = vadd.f32 0.0, %v881
        %883 = vdwg.mxu0
        %884 = vmatpush.msra.mxu0 0.0
        %885 = vmatpush.msra.mxu0 0.0
        %886 = vmatpush.msra.mxu0 0.0
        %887 = vmatpush.msra.mxu0 0.0
        %888 = vmatpush.msra.mxu0 0.0
        %889 = vmatpush.msra.mxu0 0.0
        %890 = vmatpush.msra.mxu0 0.0
        %891 = vmatpush.msra.mxu0 0.0
        %892 = vmatpush.msra.mxu0 0.0
        %893 = vmatpush.msra.mxu0 0.0
        %894 = vmatpush.msra.mxu0 0.0
        %895 = vmatpush.msra.mxu0 0.0
        %896 = vmatpush.msra.mxu0 0.0
        %897 = vmatpush.msra.mxu0 0.0
        %898 = vmatpush.msra.mxu0 %v813
        %899 = vmatpush.msra.mxu0 %v810
        %900 = vmatmul.f32.gmra.mxu0 %v442
        %v901 = vpop.f32.mrf.mxu0
        %v902 = vadd.f32 0.0, %v901
        %903 = vdwg.mxu0
        %904 = vmatpush.msra.mxu0 0.0
        %905 = vmatpush.msra.mxu0 0.0
        %906 = vmatpush.msra.mxu0 0.0
        %907 = vmatpush.msra.mxu0 0.0
        %908 = vmatpush.msra.mxu0 0.0
        %909 = vmatpush.msra.mxu0 0.0
        %910 = vmatpush.msra.mxu0 0.0
        %911 = vmatpush.msra.mxu0 0.0
        %912 = vmatpush.msra.mxu0 0.0
        %913 = vmatpush.msra.mxu0 0.0
        %914 = vmatpush.msra.mxu0 0.0
        %915 = vmatpush.msra.mxu0 0.0
        %916 = vmatpush.msra.mxu0 0.0
        %917 = vmatpush.msra.mxu0 0.0
        %918 = vmatpush.msra.mxu0 %v842
        %919 = vmatpush.msra.mxu0 %v839
        %920 = vmatmul.f32.gmra.mxu0 %v442
        %v921 = vpop.f32.mrf.mxu0
        %v922 = vadd.f32 0.0, %v921
        %923 = vdwg.mxu0
        %v924 = vmul.f32 %v316, %v316
        %v925 = vmul.f32 %v317, %v317
        %v926 = vmul.f32 %v318, %v318
        %v927 = vmul.f32 %v319, %v319
        %v928 = vmul.f32 %v320, %v320
        %v929 = vmul.f32 %v321, %v321
        %v930 = vmul.f32 %v322, %v322
        %v931 = vmul.f32 %v323, %v323
        %v933 = vsel %vm324, %v924, 0
        %v936 = vsel %vm324, %v925, 0
        %938 = vmatpush.msra.mxu0 0.0
        %939 = vmatpush.msra.mxu0 0.0
        %940 = vmatpush.msra.mxu0 0.0
        %941 = vmatpush.msra.mxu0 0.0
        %942 = vmatpush.msra.mxu0 0.0
        %943 = vmatpush.msra.mxu0 0.0
        %944 = vmatpush.msra.mxu0 0.0
        %945 = vmatpush.msra.mxu0 0.0
        %946 = vmatpush.msra.mxu0 0.0
        %947 = vmatpush.msra.mxu0 0.0
        %948 = vmatpush.msra.mxu0 0.0
        %949 = vmatpush.msra.mxu0 0.0
        %950 = vmatpush.msra.mxu0 0.0
        %951 = vmatpush.msra.mxu0 0.0
        %952 = vmatpush.msra.mxu0 %v306
        %953 = vmatpush.msra.mxu0 %v305
        %954 = vmatmul.f32.gmra.mxu0 %v933
        %v955 = vpop.f32.mrf.mxu0
        %v956 = vadd.f32 0.0, %v955
        %957 = vmatmul.f32.gmra.mxu0 %v936
        %v958 = vpop.f32.mrf.mxu0
        %v959 = vadd.f32 0.0, %v958
        %960 = vdwg.mxu0
        %v962 = vsel %vm324, %v926, 0
        %v965 = vsel %vm324, %v927, 0
        %967 = vmatpush.msra.mxu0 0.0
        %968 = vmatpush.msra.mxu0 0.0
        %969 = vmatpush.msra.mxu0 0.0
        %970 = vmatpush.msra.mxu0 0.0
        %971 = vmatpush.msra.mxu0 0.0
        %972 = vmatpush.msra.mxu0 0.0
        %973 = vmatpush.msra.mxu0 0.0
        %974 = vmatpush.msra.mxu0 0.0
        %975 = vmatpush.msra.mxu0 0.0
        %976 = vmatpush.msra.mxu0 0.0
        %977 = vmatpush.msra.mxu0 0.0
        %978 = vmatpush.msra.mxu0 0.0
        %979 = vmatpush.msra.mxu0 0.0
        %980 = vmatpush.msra.mxu0 0.0
        %981 = vmatpush.msra.mxu0 %v306
        %982 = vmatpush.msra.mxu0 %v305
        %983 = vmatmul.f32.gmra.mxu0 %v962
        %v984 = vpop.f32.mrf.mxu0
        %v985 = vadd.f32 0.0, %v984
        %986 = vmatmul.f32.gmra.mxu0 %v965
        %v987 = vpop.f32.mrf.mxu0
        %v988 = vadd.f32 0.0, %v987
        %989 = vdwg.mxu0
        %v991 = vsel %vm324, %v928, 0
        %v994 = vsel %vm324, %v929, 0
        %996 = vmatpush.msra.mxu0 0.0
        %997 = vmatpush.msra.mxu0 0.0
        %998 = vmatpush.msra.mxu0 0.0
        %999 = vmatpush.msra.mxu0 0.0
        %1000 = vmatpush.msra.mxu0 0.0
        %1001 = vmatpush.msra.mxu0 0.0
        %1002 = vmatpush.msra.mxu0 0.0
        %1003 = vmatpush.msra.mxu0 0.0
        %1004 = vmatpush.msra.mxu0 0.0
        %1005 = vmatpush.msra.mxu0 0.0
        %1006 = vmatpush.msra.mxu0 0.0
        %1007 = vmatpush.msra.mxu0 0.0
        %1008 = vmatpush.msra.mxu0 0.0
        %1009 = vmatpush.msra.mxu0 0.0
        %1010 = vmatpush.msra.mxu0 %v306
        %1011 = vmatpush.msra.mxu0 %v305
        %1012 = vmatmul.f32.gmra.mxu0 %v991
        %v1013 = vpop.f32.mrf.mxu0
        %v1014 = vadd.f32 0.0, %v1013
        %1015 = vmatmul.f32.gmra.mxu0 %v994
        %v1016 = vpop.f32.mrf.mxu0
        %v1017 = vadd.f32 0.0, %v1016
        %1018 = vdwg.mxu0
        %v1020 = vsel %vm324, %v930, 0
        %v1023 = vsel %vm324, %v931, 0
        %1025 = vmatpush.msra.mxu0 0.0
        %1026 = vmatpush.msra.mxu0 0.0
        %1027 = vmatpush.msra.mxu0 0.0
        %1028 = vmatpush.msra.mxu0 0.0
        %1029 = vmatpush.msra.mxu0 0.0
        %1030 = vmatpush.msra.mxu0 0.0
        %1031 = vmatpush.msra.mxu0 0.0
        %1032 = vmatpush.msra.mxu0 0.0
        %1033 = vmatpush.msra.mxu0 0.0
        %1034 = vmatpush.msra.mxu0 0.0
        %1035 = vmatpush.msra.mxu0 0.0
        %1036 = vmatpush.msra.mxu0 0.0
        %1037 = vmatpush.msra.mxu0 0.0
        %1038 = vmatpush.msra.mxu0 0.0
        %1039 = vmatpush.msra.mxu0 %v306
        %1040 = vmatpush.msra.mxu0 %v305
        %1041 = vmatmul.f32.gmra.mxu0 %v1020
        %v1042 = vpop.f32.mrf.mxu0
        %v1043 = vadd.f32 0.0, %v1042
        %1044 = vmatmul.f32.gmra.mxu0 %v1023
        %v1045 = vpop.f32.mrf.mxu0
        %v1046 = vadd.f32 0.0, %v1045
        %1047 = vdwg.mxu0
        %1048 = vmatpush.msra.mxu0 0.0
        %1049 = vmatpush.msra.mxu0 0.0
        %1050 = vmatpush.msra.mxu0 0.0
        %1051 = vmatpush.msra.mxu0 0.0
        %1052 = vmatpush.msra.mxu0 0.0
        %1053 = vmatpush.msra.mxu0 0.0
        %1054 = vmatpush.msra.mxu0 0.0
        %1055 = vmatpush.msra.mxu0 0.0
        %1056 = vmatpush.msra.mxu0 0.0
        %1057 = vmatpush.msra.mxu0 0.0
        %1058 = vmatpush.msra.mxu0 0.0
        %1059 = vmatpush.msra.mxu0 0.0
        %1060 = vmatpush.msra.mxu0 0.0
        %1061 = vmatpush.msra.mxu0 0.0
        %1062 = vmatpush.msra.mxu0 %v959
        %1063 = vmatpush.msra.mxu0 %v956
        %1064 = vmatmul.f32.gmra.mxu0 %v442
        %v1065 = vpop.f32.mrf.mxu0
        %v1066 = vadd.f32 0.0, %v1065
        %1067 = vdwg.mxu0
        %1068 = vmatpush.msra.mxu0 0.0
        %1069 = vmatpush.msra.mxu0 0.0
        %1070 = vmatpush.msra.mxu0 0.0
        %1071 = vmatpush.msra.mxu0 0.0
        %1072 = vmatpush.msra.mxu0 0.0
        %1073 = vmatpush.msra.mxu0 0.0
        %1074 = vmatpush.msra.mxu0 0.0
        %1075 = vmatpush.msra.mxu0 0.0
        %1076 = vmatpush.msra.mxu0 0.0
        %1077 = vmatpush.msra.mxu0 0.0
        %1078 = vmatpush.msra.mxu0 0.0
        %1079 = vmatpush.msra.mxu0 0.0
        %1080 = vmatpush.msra.mxu0 0.0
        %1081 = vmatpush.msra.mxu0 0.0
        %1082 = vmatpush.msra.mxu0 %v988
        %1083 = vmatpush.msra.mxu0 %v985
        %1084 = vmatmul.f32.gmra.mxu0 %v442
        %v1085 = vpop.f32.mrf.mxu0
        %v1086 = vadd.f32 0.0, %v1085
        %1087 = vdwg.mxu0
        %1088 = vmatpush.msra.mxu0 0.0
        %1089 = vmatpush.msra.mxu0 0.0
        %1090 = vmatpush.msra.mxu0 0.0
        %1091 = vmatpush.msra.mxu0 0.0
        %1092 = vmatpush.msra.mxu0 0.0
        %1093 = vmatpush.msra.mxu0 0.0
        %1094 = vmatpush.msra.mxu0 0.0
        %1095 = vmatpush.msra.mxu0 0.0
        %1096 = vmatpush.msra.mxu0 0.0
        %1097 = vmatpush.msra.mxu0 0.0
        %1098 = vmatpush.msra.mxu0 0.0
        %1099 = vmatpush.msra.mxu0 0.0
        %1100 = vmatpush.msra.mxu0 0.0
        %1101 = vmatpush.msra.mxu0 0.0
        %1102 = vmatpush.msra.mxu0 %v1017
        %1103 = vmatpush.msra.mxu0 %v1014
        %1104 = vmatmul.f32.gmra.mxu0 %v442
        %v1105 = vpop.f32.mrf.mxu0
        %v1106 = vadd.f32 0.0, %v1105
        %1107 = vdwg.mxu0
        %1108 = vmatpush.msra.mxu0 0.0
        %1109 = vmatpush.msra.mxu0 0.0
        %1110 = vmatpush.msra.mxu0 0.0
        %1111 = vmatpush.msra.mxu0 0.0
        %1112 = vmatpush.msra.mxu0 0.0
        %1113 = vmatpush.msra.mxu0 0.0
        %1114 = vmatpush.msra.mxu0 0.0
        %1115 = vmatpush.msra.mxu0 0.0
        %1116 = vmatpush.msra.mxu0 0.0
        %1117 = vmatpush.msra.mxu0 0.0
        %1118 = vmatpush.msra.mxu0 0.0
        %1119 = vmatpush.msra.mxu0 0.0
        %1120 = vmatpush.msra.mxu0 0.0
        %1121 = vmatpush.msra.mxu0 0.0
        %1122 = vmatpush.msra.mxu0 %v1046
        %1123 = vmatpush.msra.mxu0 %v1043
        %1124 = vmatmul.f32.gmra.mxu0 %v442
        %v1125 = vpop.f32.mrf.mxu0
        %v1126 = vadd.f32 0.0, %v1125
        %1127 = vdwg.mxu0
        %v1128 = vmul.f32 %v308, %v316
        %v1129 = vmul.f32 %v309, %v317
        %v1130 = vmul.f32 %v310, %v318
        %v1131 = vmul.f32 %v311, %v319
        %v1132 = vmul.f32 %v312, %v320
        %v1133 = vmul.f32 %v313, %v321
        %v1134 = vmul.f32 %v314, %v322
        %v1135 = vmul.f32 %v315, %v323
        %v1137 = vsel %vm324, %v1128, 0
        %v1140 = vsel %vm324, %v1129, 0
        %1142 = vmatpush.msra.mxu0 0.0
        %1143 = vmatpush.msra.mxu0 0.0
        %1144 = vmatpush.msra.mxu0 0.0
        %1145 = vmatpush.msra.mxu0 0.0
        %1146 = vmatpush.msra.mxu0 0.0
        %1147 = vmatpush.msra.mxu0 0.0
        %1148 = vmatpush.msra.mxu0 0.0
        %1149 = vmatpush.msra.mxu0 0.0
        %1150 = vmatpush.msra.mxu0 0.0
        %1151 = vmatpush.msra.mxu0 0.0
        %1152 = vmatpush.msra.mxu0 0.0
        %1153 = vmatpush.msra.mxu0 0.0
        %1154 = vmatpush.msra.mxu0 0.0
        %1155 = vmatpush.msra.mxu0 0.0
        %1156 = vmatpush.msra.mxu0 %v306
        %1157 = vmatpush.msra.mxu0 %v305
        %1158 = vmatmul.f32.gmra.mxu0 %v1137
        %v1159 = vpop.f32.mrf.mxu0
        %v1160 = vadd.f32 0.0, %v1159
        %1161 = vmatmul.f32.gmra.mxu0 %v1140
        %v1162 = vpop.f32.mrf.mxu0
        %v1163 = vadd.f32 0.0, %v1162
        %1164 = vdwg.mxu0
        %v1166 = vsel %vm324, %v1130, 0
        %v1169 = vsel %vm324, %v1131, 0
        %1171 = vmatpush.msra.mxu0 0.0
        %1172 = vmatpush.msra.mxu0 0.0
        %1173 = vmatpush.msra.mxu0 0.0
        %1174 = vmatpush.msra.mxu0 0.0
        %1175 = vmatpush.msra.mxu0 0.0
        %1176 = vmatpush.msra.mxu0 0.0
        %1177 = vmatpush.msra.mxu0 0.0
        %1178 = vmatpush.msra.mxu0 0.0
        %1179 = vmatpush.msra.mxu0 0.0
        %1180 = vmatpush.msra.mxu0 0.0
        %1181 = vmatpush.msra.mxu0 0.0
        %1182 = vmatpush.msra.mxu0 0.0
        %1183 = vmatpush.msra.mxu0 0.0
        %1184 = vmatpush.msra.mxu0 0.0
        %1185 = vmatpush.msra.mxu0 %v306
        %1186 = vmatpush.msra.mxu0 %v305
        %1187 = vmatmul.f32.gmra.mxu0 %v1166
        %v1188 = vpop.f32.mrf.mxu0
        %v1189 = vadd.f32 0.0, %v1188
        %1190 = vmatmul.f32.gmra.mxu0 %v1169
        %v1191 = vpop.f32.mrf.mxu0
        %v1192 = vadd.f32 0.0, %v1191
        %1193 = vdwg.mxu0
        %v1195 = vsel %vm324, %v1132, 0
        %v1198 = vsel %vm324, %v1133, 0
        %1200 = vmatpush.msra.mxu0 0.0
        %1201 = vmatpush.msra.mxu0 0.0
        %1202 = vmatpush.msra.mxu0 0.0
        %1203 = vmatpush.msra.mxu0 0.0
        %1204 = vmatpush.msra.mxu0 0.0
        %1205 = vmatpush.msra.mxu0 0.0
        %1206 = vmatpush.msra.mxu0 0.0
        %1207 = vmatpush.msra.mxu0 0.0
        %1208 = vmatpush.msra.mxu0 0.0
        %1209 = vmatpush.msra.mxu0 0.0
        %1210 = vmatpush.msra.mxu0 0.0
        %1211 = vmatpush.msra.mxu0 0.0
        %1212 = vmatpush.msra.mxu0 0.0
        %1213 = vmatpush.msra.mxu0 0.0
        %1214 = vmatpush.msra.mxu0 %v306
        %1215 = vmatpush.msra.mxu0 %v305
        %1216 = vmatmul.f32.gmra.mxu0 %v1195
        %v1217 = vpop.f32.mrf.mxu0
        %v1218 = vadd.f32 0.0, %v1217
        %1219 = vmatmul.f32.gmra.mxu0 %v1198
        %v1220 = vpop.f32.mrf.mxu0
        %v1221 = vadd.f32 0.0, %v1220
        %1222 = vdwg.mxu0
        %v1224 = vsel %vm324, %v1134, 0
        %v1227 = vsel %vm324, %v1135, 0
        %1229 = vmatpush.msra.mxu0 0.0
        %1230 = vmatpush.msra.mxu0 0.0
        %1231 = vmatpush.msra.mxu0 0.0
        %1232 = vmatpush.msra.mxu0 0.0
        %1233 = vmatpush.msra.mxu0 0.0
        %1234 = vmatpush.msra.mxu0 0.0
        %1235 = vmatpush.msra.mxu0 0.0
        %1236 = vmatpush.msra.mxu0 0.0
        %1237 = vmatpush.msra.mxu0 0.0
        %1238 = vmatpush.msra.mxu0 0.0
        %1239 = vmatpush.msra.mxu0 0.0
        %1240 = vmatpush.msra.mxu0 0.0
        %1241 = vmatpush.msra.mxu0 0.0
        %1242 = vmatpush.msra.mxu0 0.0
        %1243 = vmatpush.msra.mxu0 %v306
        %1244 = vmatpush.msra.mxu0 %v305
        %1245 = vmatmul.f32.gmra.mxu0 %v1224
        %v1246 = vpop.f32.mrf.mxu0
        %v1247 = vadd.f32 0.0, %v1246
        %1248 = vmatmul.f32.gmra.mxu0 %v1227
        %v1249 = vpop.f32.mrf.mxu0
        %v1250 = vadd.f32 0.0, %v1249
        %1251 = vdwg.mxu0
        %1252 = vmatpush.msra.mxu0 0.0
        %1253 = vmatpush.msra.mxu0 0.0
        %1254 = vmatpush.msra.mxu0 0.0
        %1255 = vmatpush.msra.mxu0 0.0
        %1256 = vmatpush.msra.mxu0 0.0
        %1257 = vmatpush.msra.mxu0 0.0
        %1258 = vmatpush.msra.mxu0 0.0
        %1259 = vmatpush.msra.mxu0 0.0
        %1260 = vmatpush.msra.mxu0 0.0
        %1261 = vmatpush.msra.mxu0 0.0
        %1262 = vmatpush.msra.mxu0 0.0
        %1263 = vmatpush.msra.mxu0 0.0
        %1264 = vmatpush.msra.mxu0 0.0
        %1265 = vmatpush.msra.mxu0 0.0
        %1266 = vmatpush.msra.mxu0 %v1163
        %1267 = vmatpush.msra.mxu0 %v1160
        %1268 = vmatmul.f32.gmra.mxu0 %v442
        %v1269 = vpop.f32.mrf.mxu0
        %v1270 = vadd.f32 0.0, %v1269
        %1271 = vdwg.mxu0
        %1272 = vmatpush.msra.mxu0 0.0
        %1273 = vmatpush.msra.mxu0 0.0
        %1274 = vmatpush.msra.mxu0 0.0
        %1275 = vmatpush.msra.mxu0 0.0
        %1276 = vmatpush.msra.mxu0 0.0
        %1277 = vmatpush.msra.mxu0 0.0
        %1278 = vmatpush.msra.mxu0 0.0
        %1279 = vmatpush.msra.mxu0 0.0
        %1280 = vmatpush.msra.mxu0 0.0
        %1281 = vmatpush.msra.mxu0 0.0
        %1282 = vmatpush.msra.mxu0 0.0
        %1283 = vmatpush.msra.mxu0 0.0
        %1284 = vmatpush.msra.mxu0 0.0
        %1285 = vmatpush.msra.mxu0 0.0
        %1286 = vmatpush.msra.mxu0 %v1192
        %1287 = vmatpush.msra.mxu0 %v1189
        %1288 = vmatmul.f32.gmra.mxu0 %v442
        %v1289 = vpop.f32.mrf.mxu0
        %v1290 = vadd.f32 0.0, %v1289
        %1291 = vdwg.mxu0
        %1292 = vmatpush.msra.mxu0 0.0
        %1293 = vmatpush.msra.mxu0 0.0
        %1294 = vmatpush.msra.mxu0 0.0
        %1295 = vmatpush.msra.mxu0 0.0
        %1296 = vmatpush.msra.mxu0 0.0
        %1297 = vmatpush.msra.mxu0 0.0
        %1298 = vmatpush.msra.mxu0 0.0
        %1299 = vmatpush.msra.mxu0 0.0
        %1300 = vmatpush.msra.mxu0 0.0
        %1301 = vmatpush.msra.mxu0 0.0
        %1302 = vmatpush.msra.mxu0 0.0
        %1303 = vmatpush.msra.mxu0 0.0
        %1304 = vmatpush.msra.mxu0 0.0
        %1305 = vmatpush.msra.mxu0 0.0
        %1306 = vmatpush.msra.mxu0 %v1221
        %1307 = vmatpush.msra.mxu0 %v1218
        %1308 = vmatmul.f32.gmra.mxu0 %v442
        %v1309 = vpop.f32.mrf.mxu0
        %v1310 = vadd.f32 0.0, %v1309
        %1311 = vdwg.mxu0
        %1312 = vmatpush.msra.mxu0 0.0
        %1313 = vmatpush.msra.mxu0 0.0
        %1314 = vmatpush.msra.mxu0 0.0
        %1315 = vmatpush.msra.mxu0 0.0
        %1316 = vmatpush.msra.mxu0 0.0
        %1317 = vmatpush.msra.mxu0 0.0
        %1318 = vmatpush.msra.mxu0 0.0
        %1319 = vmatpush.msra.mxu0 0.0
        %1320 = vmatpush.msra.mxu0 0.0
        %1321 = vmatpush.msra.mxu0 0.0
        %1322 = vmatpush.msra.mxu0 0.0
        %1323 = vmatpush.msra.mxu0 0.0
        %1324 = vmatpush.msra.mxu0 0.0
        %1325 = vmatpush.msra.mxu0 0.0
        %1326 = vmatpush.msra.mxu0 %v1250
        %1327 = vmatpush.msra.mxu0 %v1247
        %1328 = vmatmul.f32.gmra.mxu0 %v442
        %v1329 = vpop.f32.mrf.mxu0
        %v1330 = vadd.f32 0.0, %v1329
        %1331 = vdwg.mxu0
        %v1332 = vmul.f32 %v462, %v462
        %v1333 = vmul.f32 %v482, %v482
        %v1334 = vmul.f32 %v502, %v502
        %v1335 = vmul.f32 %v522, %v522
        %v1336 = vmul.f32 %v658, %v658
        %v1337 = vmul.f32 %v678, %v678
        %v1338 = vmul.f32 %v698, %v698
        %v1339 = vmul.f32 %v718, %v718
        %v1340 = vmul.f32 %v462, %v658
        %v1341 = vmul.f32 %v482, %v678
        %v1342 = vmul.f32 %v502, %v698
        %v1343 = vmul.f32 %v522, %v718
        %v1344 = vsub.f32 %v862, %v1332
        %v1345 = vsub.f32 %v882, %v1333
        %v1346 = vsub.f32 %v902, %v1334
        %v1347 = vsub.f32 %v922, %v1335
        %v1348 = vsub.f32 %v1066, %v1336
        %v1349 = vsub.f32 %v1086, %v1337
        %v1350 = vsub.f32 %v1106, %v1338
        %v1351 = vsub.f32 %v1126, %v1339
        %v1352 = vsub.f32 %v1270, %v1340
        %v1353 = vsub.f32 %v1290, %v1341
        %v1354 = vsub.f32 %v1310, %v1342
        %v1355 = vsub.f32 %v1330, %v1343
        %v1356 = vmul.f32 %v1352, 2.0
        %v1357 = vmul.f32 %v1353, 2.0
        %v1358 = vmul.f32 %v1354, 2.0
        %v1359 = vmul.f32 %v1355, 2.0
        %v1360 = vstv %s304
        %v1361 = vadd.f32 %v1356, %v1360
        %v1362 = vadd.f32 %v1357, %v1360
        %v1363 = vadd.f32 %v1358, %v1360
        %v1364 = vadd.f32 %v1359, %v1360
        %v1365 = vadd.f32 %v1344, %v1348
        %v1366 = vadd.f32 %v1345, %v1349
        %v1367 = vadd.f32 %v1346, %v1350
        %v1368 = vadd.f32 %v1347, %v1351
        %v1369 = vadd.f32 %v1365, %v1360
        %v1370 = vadd.f32 %v1366, %v1360
        %v1371 = vadd.f32 %v1367, %v1360
        %v1372 = vadd.f32 %v1368, %v1360
        %v1373 = vmul.f32 %v1340, 2.0
        %v1374 = vmul.f32 %v1341, 2.0
        %v1375 = vmul.f32 %v1342, 2.0
        %v1376 = vmul.f32 %v1343, 2.0
        %v1377 = vstv %s303
        %v1378 = vadd.f32 %v1373, %v1377
        %v1379 = vadd.f32 %v1374, %v1377
        %v1380 = vadd.f32 %v1375, %v1377
        %v1381 = vadd.f32 %v1376, %v1377
        %v1382 = vmul.f32 %v1378, %v1361
        %v1383 = vmul.f32 %v1379, %v1362
        %v1384 = vmul.f32 %v1380, %v1363
        %v1385 = vmul.f32 %v1381, %v1364
        %v1386 = vadd.f32 %v1332, %v1336
        %v1387 = vadd.f32 %v1333, %v1337
        %v1388 = vadd.f32 %v1334, %v1338
        %v1389 = vadd.f32 %v1335, %v1339
        %v1390 = vadd.f32 %v1386, %v1377
        %v1391 = vadd.f32 %v1387, %v1377
        %v1392 = vadd.f32 %v1388, %v1377
        %v1393 = vadd.f32 %v1389, %v1377
        %v1394 = vmul.f32 %v1390, %v1369
        %v1395 = vmul.f32 %v1391, %v1370
        %v1396 = vmul.f32 %v1392, %v1371
        %v1397 = vmul.f32 %v1393, %v1372
        %v1398 = vrcp.pop %v1394
        %v1399 = vmul.f32 %v1394, %v1398
        %v1400 = vsub.f32 1.0, %v1399
        %v1401 = vmul.f32 %v1398, %v1400
        %v1402 = vadd.f32 %v1398, %v1401
        %vm1403 = vweird.f32 %v1394
        %vm1404 = vweird.f32 %v1398
        %vm1405 = vmor %vm1403, %vm1404
        %v1406 = vsel %vm1405, %v1398, %v1402
        %v1407 = vand.u32 2147483647, %v1394
        %vm1408 = vcmp.eq.f32.partialorder %v1407, 8.507059e+37
        %v1409 = vand.u32 %v1394, 2147483648
        %v1410 = vor.u32 1.1754944e-38, %v1409
        %v1411 = vsel %vm1408, %v1410, %v1406
        %v1412 = vmul.f32 %v1382, %v1411
        %v1413 = vrcp.pop %v1395
        %v1414 = vmul.f32 %v1395, %v1413
        %v1415 = vsub.f32 1.0, %v1414
        %v1416 = vmul.f32 %v1413, %v1415
        %v1417 = vadd.f32 %v1413, %v1416
        %vm1418 = vweird.f32 %v1395
        %vm1419 = vweird.f32 %v1413
        %vm1420 = vmor %vm1418, %vm1419
        %v1421 = vsel %vm1420, %v1413, %v1417
        %v1422 = vand.u32 2147483647, %v1395
        %vm1423 = vcmp.eq.f32.partialorder %v1422, 8.507059e+37
        %v1424 = vand.u32 %v1395, 2147483648
        %v1425 = vor.u32 1.1754944e-38, %v1424
        %v1426 = vsel %vm1423, %v1425, %v1421
        %v1427 = vmul.f32 %v1383, %v1426
        %v1428 = vrcp.pop %v1396
        %v1429 = vmul.f32 %v1396, %v1428
        %v1430 = vsub.f32 1.0, %v1429
        %v1431 = vmul.f32 %v1428, %v1430
        %v1432 = vadd.f32 %v1428, %v1431
        %vm1433 = vweird.f32 %v1396
        %vm1434 = vweird.f32 %v1428
        %vm1435 = vmor %vm1433, %vm1434
        %v1436 = vsel %vm1435, %v1428, %v1432
        %v1437 = vand.u32 2147483647, %v1396
        %vm1438 = vcmp.eq.f32.partialorder %v1437, 8.507059e+37
        %v1439 = vand.u32 %v1396, 2147483648
        %v1440 = vor.u32 1.1754944e-38, %v1439
        %v1441 = vsel %vm1438, %v1440, %v1436
        %v1442 = vmul.f32 %v1384, %v1441
        %v1443 = vrcp.pop %v1397
        %v1444 = vmul.f32 %v1397, %v1443
        %v1445 = vsub.f32 1.0, %v1444
        %v1446 = vmul.f32 %v1443, %v1445
        %v1447 = vadd.f32 %v1443, %v1446
        %vm1448 = vweird.f32 %v1397
        %vm1449 = vweird.f32 %v1443
        %vm1450 = vmor %vm1448, %vm1449
        %v1451 = vsel %vm1450, %v1443, %v1447
        %v1452 = vand.u32 2147483647, %v1397
        %vm1453 = vcmp.eq.f32.partialorder %v1452, 8.507059e+37
        %v1454 = vand.u32 %v1397, 2147483648
        %v1455 = vor.u32 1.1754944e-38, %v1454
        %v1456 = vsel %vm1453, %v1455, %v1451
        %v1457 = vmul.f32 %v1385, %v1456
        %vm1458 = vcmask 46080
        %v1459 = vsel %vm1458, %v1412, 0.0
        %v1460 = vsel %vm1458, %v1427, 0.0
        %v1461 = vadd.f32 %v1459, %v1460
        %v1462 = vsel %vm1458, %v1442, 0.0
        %v1463 = vadd.f32 %v1461, %v1462
        %v1464 = vsel %vm1458, %v1457, 0.0
        %v1465 = vadd.f32 %v1463, %v1464
        %1466 = vadd.xlane.f32.xlu0 %v1465
        %v1467 = vpop.xlane.xlu0 %1466
        %v1468 = vrot.slane %v1467, 4
        %v1469 = vadd.f32 %v1467, %v1468
        %v1470 = vrot.slane %v1469, 2
        %v1471 = vadd.f32 %v1469, %v1470
        %v1472 = vrot.slane %v1471, 1
        %v1473 = vadd.f32 %v1471, %v1472
        %s1474 = vtos %v1473
        %v1475 = vstv %s1474
        %vm1476 = vcmask 0
        %1477 = vst.msk [vmem:[%s302] sm:$0x1] %vm1476, %v1475
        %p1478 = scmp.lt.s32.totalorder %s23, 1
        %s1479 = scalar_select %p1478, %s23, 1
        %s1480 = scalar_lea.vmem %s5, %s1479
        // Predicated region
        $region53: #{tpu_custom_call.1} parent=39 // pred_check
          %p1481 = pneg %p156
        $region54: #{tpu_custom_call.1} parent=39 // pred_check_branch
          %1483 = sbr.rel (%p1481) target = $region56
        $region55: #{tpu_custom_call.1} parent=39 // pred_region
          _
        $region56: #{tpu_custom_call.1} parent=39 // pred_fallthru
          _
      $region40: #{tpu_custom_call.1} parent=5 // pred_fallthru
        _
      %p1484 = scmp.le.s32.totalorder 2, %s18
      // Predicated region
      $region57: #{tpu_custom_call.1} parent=5 // pred_check
        %p1485 = pneg %p1484
      $region58: #{tpu_custom_call.1} parent=5 // pred_check_branch
        %1487 = sbr.rel (%p1485) target = $region60
      $region59: #{tpu_custom_call.1} parent=5 // pred_region
        %s1488 = ssub.s32 %s18, 2
        // Predicated region
        $region61: #{tpu_custom_call.1} parent=59 // pred_check
          %p1489 = pneg %p162
        $region62: #{tpu_custom_call.1} parent=59 // pred_check_branch
          %1491 = sbr.rel (%p1489) target = $region64
        $region63: #{tpu_custom_call.1} parent=59 // pred_region
          %p1492 = scmp.lt.s32.totalorder %s24, 1
          %s1493 = scalar_select %p1492, %s24, 1
          %s1494 = scalar_lea.vmem %s5, %s1493
        $region64: #{tpu_custom_call.1} parent=59 // pred_fallthru
          _
      $region60: #{tpu_custom_call.1} parent=5 // pred_fallthru
        _
    $region6: #{tpu_custom_call.1} parent=1 // loop_footer
      %s22 = sadd.s32 1, %s18
    $region7: #{tpu_custom_call.1} parent=1 // loop_footer_branch
      %17 = sbr.rel target = $region3
    $region8: #{tpu_custom_call.1} parent=1 // loop_exit
      _
    %1495 = vsyncpa [#allocation3], 1
    %s1496 = scalar_lea.sflag [#allocation3], 1
    %1497 = vsyncpa %s1496, 1
    %1498 = vsyncpa [#allocation7], 1
    %s1499 = scalar_lea.sflag [#allocation7], 1
    %1500 = vsyncpa %s1499, 1
    %1501 = vsyncpa [#allocation4], 1
    %s1502 = scalar_lea.sflag [#allocation4], 1
    %1503 = vsyncpa %s1502, 1

</llo_original>
